<compile_context>
chip_gen: v7x
topology: tpu7x:2x2x1
jax: 0.10.0
libtpu: 0.0.40
codegen_flags: <defaults>
</compile_context>

<pallas_src>
import math
from functools import partial

import numpy as np
import jax
import jax.numpy as jnp
from jax.experimental import pallas as pl
from jax.experimental.pallas import tpu as pltpu


# ----------------------------------------------------------------------------
# Pallas kernel: whole DWSeparableConv forward for one batch element.
#   x_ref  : (1, H, W, C)          input tile (NHWC)
#   wdw_ref: (k*k, C)              depthwise weights, one per-channel tap per (dy,dx)
#   sb1_ref: (2, C)                folded BN1 scale (row 0) / bias (row 1)
#   wpw_ref: (C, Co)               pointwise 1x1 conv weight (in, out)
#   sb2_ref: (2, Co)               folded BN2 scale/bias
#   o_ref  : (1, H, W, Co)         output tile
#   pad_ref: (H+2P, W+2P, C)       VMEM scratch holding the zero-padded input
# ----------------------------------------------------------------------------
def dwsep_kernel(x_ref, wdw_ref, sb1_ref, wpw_ref, sb2_ref, o_ref, pad_ref, *, k):
    H, W, C = x_ref.shape[1], x_ref.shape[2], x_ref.shape[3]
    Co = o_ref.shape[3]
    P = k // 2

    # Zero only the P-wide halo border (the interior is fully overwritten below).
    # Done every grid step so each TensorCore's private scratch is initialized.
    if P > 0:
        zrow = jnp.zeros((P, W + 2 * P, C), pad_ref.dtype)
        zcol = jnp.zeros((H + 2 * P, P, C), pad_ref.dtype)
        pad_ref[0:P, :, :] = zrow
        pad_ref[H + P:H + 2 * P, :, :] = zrow
        pad_ref[:, 0:P, :] = zcol
        pad_ref[:, W + P:W + 2 * P, :] = zcol

    # Stage the input into the padded scratch with a single full-plane store.
    pad_ref[P:H + P, P:W + P, :] = x_ref[0]

    # --- depthwise k x k conv (stride 1, SAME padding): k*k full-plane MACs (VPU) ---
    wdw = wdw_ref[...]                                        # (k*k, C)
    acc = jnp.zeros((H, W, C), jnp.float32)
    for dy in range(k):
        for dx in range(k):
            i = dy * k + dx
            tap = wdw[i:i + 1, :]                             # (1, C) -> broadcast
            acc = acc + pad_ref[dy:dy + H, dx:dx + W, :] * tap

    # folded BN1 + SiLU, applied once over the whole plane
    h = acc * sb1_ref[0:1, :] + sb1_ref[1:2, :]
    h = h * jax.nn.sigmoid(h)

    # --- pointwise 1x1 conv: ONE flattened (H*W, C) @ (C, Co) matmul on the MXU ---
    y = jnp.dot(h.reshape(H * W, C), wpw_ref[...],
                preferred_element_type=jnp.float32)           # (H*W, Co)
    y = y * sb2_ref[0:1, :] + sb2_ref[1:2, :]
    y = y * jax.nn.sigmoid(y)                                 # SiLU

    # single full-block output store
    o_ref[...] = y.reshape(1, H, W, Co).astype(o_ref.dtype)


def dw_separable_conv_forward(x_nchw, wdw, sb1, wpw, sb2, *, k=3, stride=1):
    """DWSeparableConv forward. x_nchw: (N, Cin, H, W) -> (N, Cout, H, W)."""
    assert stride == 1, "kernel implements stride=1 (SAME padding) only"
    N, C, H, W = x_nchw.shape
    Co = wpw.shape[1]
    P = k // 2

    x = jnp.transpose(x_nchw, (0, 2, 3, 1)).astype(jnp.float32)   # NCHW -> NHWC
    out = pl.pallas_call(
        partial(dwsep_kernel, k=k),
        out_shape=jax.ShapeDtypeStruct((N, H, W, Co), jnp.float32),
        grid_spec=pltpu.PrefetchScalarGridSpec(
            num_scalar_prefetch=0,
            grid=(N,),
            in_specs=[
                pl.BlockSpec((1, H, W, C), lambda n: (n, 0, 0, 0)),
                pl.BlockSpec((k * k, C), lambda n: (0, 0)),
                pl.BlockSpec((2, C), lambda n: (0, 0)),
                pl.BlockSpec((C, Co), lambda n: (0, 0)),
                pl.BlockSpec((2, Co), lambda n: (0, 0)),
            ],
            out_specs=pl.BlockSpec((1, H, W, Co), lambda n: (n, 0, 0, 0)),
            scratch_shapes=[pltpu.VMEM((H + 2 * P, W + 2 * P, C), jnp.float32)],
        ),
        compiler_params=pltpu.CompilerParams(dimension_semantics=("parallel",)),
    )(x, wdw, sb1, wpw, sb2)
    return jnp.transpose(out, (0, 3, 1, 2))                       # NHWC -> NCHW


# ----------------------------------------------------------------------------
# Pure-JAX reference (NHWC) for verification.
# ----------------------------------------------------------------------------
def ref_forward_nhwc(x, wdw, sb1, wpw, sb2, k):
    N, H, W, C = x.shape
    P = k // 2
    xp = jnp.pad(x, ((0, 0), (P, P), (P, P), (0, 0)))
    h = jnp.zeros((N, H, W, C), jnp.float32)
    for dy in range(k):
        for dx in range(k):
            h = h + xp[:, dy:dy + H, dx:dx + W, :] * wdw[dy * k + dx]
    h = h * sb1[0] + sb1[1]
    h = jax.nn.silu(h)
    y = jnp.einsum('nhwc,cd->nhwd', h, wpw)
    y = y * sb2[0] + sb2[1]
    y = jax.nn.silu(y)
    return y


def fold_bn(gamma, beta, mean, var, conv_bias=None, eps=1e-5):
    scale = gamma / jnp.sqrt(var + eps)
    shift = beta - mean * scale
    if conv_bias is not None:        # fold an (optional) conv bias into the BN shift
        shift = shift + conv_bias * scale
    return jnp.stack([scale, shift], axis=0)  # (2, C)


if __name__ == "__main__":
    key = jax.random.PRNGKey(0)

    # Small shapes consistent with the module: DWSeparableConv(4, 8, k=3, stride=1)
    N, Cin, H, W = 2, 4, 16, 16
    Cout = 8
    k = 3

    key, kx, kdw, kpw = jax.random.split(key, 4)
    x_nchw = jax.random.normal(kx, (N, Cin, H, W), dtype=jnp.float32)

    # depthwise conv weight: PyTorch (Cin, 1, k, k) with groups=Cin -> kernel layout (k*k, Cin)
    fan_dw = k * k                        # per-group fan-in = 1 * k * k
    wdw_t = jax.random.uniform(kdw, (Cin, 1, k, k), jnp.float32,
                               -1.0 / math.sqrt(fan_dw), 1.0 / math.sqrt(fan_dw))
    wdw = jnp.transpose(wdw_t[:, 0, :, :], (1, 2, 0)).reshape(k * k, Cin)

    # pointwise conv weight: PyTorch (Cout, Cin, 1, 1) -> (Cin, Cout)
    fan_pw = Cin
    wpw_t = jax.random.uniform(kpw, (Cout, Cin, 1, 1), jnp.float32,
                               -1.0 / math.sqrt(fan_pw), 1.0 / math.sqrt(fan_pw))
    wpw = jnp.transpose(wpw_t[:, :, 0, 0], (1, 0))

    # BatchNorm params (inference-mode running stats), deterministic
    key, kg1, kb1, km1, kv1, kg2, kb2, km2, kv2 = jax.random.split(key, 9)
    g1 = jax.random.uniform(kg1, (Cin,), jnp.float32, 0.5, 1.5)
    b1 = 0.1 * jax.random.normal(kb1, (Cin,), jnp.float32)
    m1 = 0.1 * jax.random.normal(km1, (Cin,), jnp.float32)
    v1 = jax.random.uniform(kv1, (Cin,), jnp.float32, 0.5, 1.5)
    g2 = jax.random.uniform(kg2, (Cout,), jnp.float32, 0.5, 1.5)
    b2 = 0.1 * jax.random.normal(kb2, (Cout,), jnp.float32)
    m2 = 0.1 * jax.random.normal(km2, (Cout,), jnp.float32)
    v2 = jax.random.uniform(kv2, (Cout,), jnp.float32, 0.5, 1.5)

    sb1 = fold_bn(g1, b1, m1, v1)   # depthwise conv: bias=False
    sb2 = fold_bn(g2, b2, m2, v2)   # pointwise conv: bias=False (module default)

    out = dw_separable_conv_forward(x_nchw, wdw, sb1, wpw, sb2, k=k, stride=1)
    out = jax.block_until_ready(out)

    # verify against pure-JAX reference
    ref = ref_forward_nhwc(jnp.transpose(x_nchw, (0, 2, 3, 1)), wdw, sb1, wpw, sb2, k)
    ref = jnp.transpose(ref, (0, 3, 1, 2))
    np.testing.assert_allclose(np.asarray(out), np.asarray(ref), rtol=1e-4, atol=1e-4)

    print("KERNEL_OK")
</pallas_src>

<mosaic_0001>
module attributes {stable_mosaic.version = 11 : i64} {
  func.func @dwsep_kernel(%arg0: i32, %arg1: memref<1x16x16x4xf32, #tpu.memory_space<vmem>>, %arg2: memref<9x4xf32, #tpu.memory_space<vmem>>, %arg3: memref<2x4xf32, #tpu.memory_space<vmem>>, %arg4: memref<4x8xf32, #tpu.memory_space<vmem>>, %arg5: memref<2x8xf32, #tpu.memory_space<vmem>>, %arg6: memref<1x16x16x8xf32, #tpu.memory_space<vmem>>, %arg7: memref<18x18x4xf32, #tpu.memory_space<vmem>>) attributes {dimension_semantics = [#tpu.dimension_semantics<parallel>], iteration_bounds = array<i64: 2>, scalar_prefetch = 0 : i64, scratch_operands = 1 : i64, tpu.core_type = #tpu.core_type<tc>, window_params = [{transform_indices = @transform_0, window_bounds = array<i64: 1, 16, 16, 4>}, {pipeline_mode = #tpu.pipeline_mode<synchronous>, transform_indices = @transform_1, window_bounds = array<i64: 9, 4>}, {pipeline_mode = #tpu.pipeline_mode<synchronous>, transform_indices = @transform_2, window_bounds = array<i64: 2, 4>}, {pipeline_mode = #tpu.pipeline_mode<synchronous>, transform_indices = @transform_3, window_bounds = array<i64: 4, 8>}, {pipeline_mode = #tpu.pipeline_mode<synchronous>, transform_indices = @transform_4, window_bounds = array<i64: 2, 8>}, {transform_indices = @transform_5, window_bounds = array<i64: 1, 16, 16, 8>}]} {
    %cst = arith.constant 0.000000e+00 : f32
    %0 = vector.broadcast %cst : f32 to vector<1x18x4xf32>
    %cst_0 = arith.constant 0.000000e+00 : f32
    %1 = vector.broadcast %cst_0 : f32 to vector<18x1x4xf32>
    %c0 = arith.constant 0 : index
    %c0_1 = arith.constant 0 : index
    %c0_2 = arith.constant 0 : index
    %2 = vector.load %arg7[%c0, %c0_1, %c0_2] : memref<18x18x4xf32, #tpu.memory_space<vmem>>, vector<1x18x4xf32>
    tpu.vector_store %arg7[%c0, %c0_1, %c0_2], %0 {strides = array<i32>} : memref<18x18x4xf32, #tpu.memory_space<vmem>>, vector<1x18x4xf32>,
    %c17 = arith.constant 17 : index
    %c0_3 = arith.constant 0 : index
    %c0_4 = arith.constant 0 : index
    %3 = vector.load %arg7[%c17, %c0_3, %c0_4] : memref<18x18x4xf32, #tpu.memory_space<vmem>>, vector<1x18x4xf32>
    tpu.vector_store %arg7[%c17, %c0_3, %c0_4], %0 {strides = array<i32>} : memref<18x18x4xf32, #tpu.memory_space<vmem>>, vector<1x18x4xf32>,
    %c0_5 = arith.constant 0 : index
    %c0_6 = arith.constant 0 : index
    %c0_7 = arith.constant 0 : index
    %4 = vector.load %arg7[%c0_5, %c0_6, %c0_7] : memref<18x18x4xf32, #tpu.memory_space<vmem>>, vector<18x1x4xf32>
    tpu.vector_store %arg7[%c0_5, %c0_6, %c0_7], %1 {strides = array<i32>} : memref<18x18x4xf32, #tpu.memory_space<vmem>>, vector<18x1x4xf32>,
    %c0_8 = arith.constant 0 : index
    %c17_9 = arith.constant 17 : index
    %c0_10 = arith.constant 0 : index
    %5 = vector.load %arg7[%c0_8, %c17_9, %c0_10] : memref<18x18x4xf32, #tpu.memory_space<vmem>>, vector<18x1x4xf32>
    tpu.vector_store %arg7[%c0_8, %c17_9, %c0_10], %1 {strides = array<i32>} : memref<18x18x4xf32, #tpu.memory_space<vmem>>, vector<18x1x4xf32>,
    %c0_11 = arith.constant 0 : index
    %c0_12 = arith.constant 0 : index
    %c0_13 = arith.constant 0 : index
    %c0_14 = arith.constant 0 : index
    %6 = vector.load %arg1[%c0_11, %c0_12, %c0_13, %c0_14] : memref<1x16x16x4xf32, #tpu.memory_space<vmem>>, vector<1x16x16x4xf32>
    %7 = vector.shape_cast %6 : vector<1x16x16x4xf32> to vector<16x16x4xf32>
    %c1 = arith.constant 1 : index
    %c1_15 = arith.constant 1 : index
    %c0_16 = arith.constant 0 : index
    %8 = vector.load %arg7[%c1, %c1_15, %c0_16] : memref<18x18x4xf32, #tpu.memory_space<vmem>>, vector<16x16x4xf32>
    tpu.vector_store %arg7[%c1, %c1_15, %c0_16], %7 {strides = array<i32>} : memref<18x18x4xf32, #tpu.memory_space<vmem>>, vector<16x16x4xf32>,
    %c0_17 = arith.constant 0 : index
    %c0_18 = arith.constant 0 : index
    %9 = vector.load %arg2[%c0_17, %c0_18] : memref<9x4xf32, #tpu.memory_space<vmem>>, vector<9x4xf32>
    %cst_19 = arith.constant 0.000000e+00 : f32
    %10 = vector.broadcast %cst_19 : f32 to vector<16x16x4xf32>
    %11 = vector.extract_strided_slice %9 {offsets = [0, 0], sizes = [1, 4], strides = [1, 1]} : vector<9x4xf32> to vector<1x4xf32>
    %c0_20 = arith.constant 0 : index
    %c0_21 = arith.constant 0 : index
    %c0_22 = arith.constant 0 : index
    %12 = vector.load %arg7[%c0_20, %c0_21, %c0_22] : memref<18x18x4xf32, #tpu.memory_space<vmem>>, vector<16x16x4xf32>
    %13 = vector.shape_cast %11 : vector<1x4xf32> to vector<1x1x4xf32>
    %14 = vector.broadcast %13 : vector<1x1x4xf32> to vector<16x16x4xf32>
    %15 = arith.mulf %12, %14 : vector<16x16x4xf32>
    %16 = arith.addf %10, %15 : vector<16x16x4xf32>
    %17 = vector.extract_strided_slice %9 {offsets = [1, 0], sizes = [1, 4], strides = [1, 1]} : vector<9x4xf32> to vector<1x4xf32>
    %c0_23 = arith.constant 0 : index
    %c1_24 = arith.constant 1 : index
    %c0_25 = arith.constant 0 : index
    %18 = vector.load %arg7[%c0_23, %c1_24, %c0_25] : memref<18x18x4xf32, #tpu.memory_space<vmem>>, vector<16x16x4xf32>
    %19 = vector.shape_cast %17 : vector<1x4xf32> to vector<1x1x4xf32>
    %20 = vector.broadcast %19 : vector<1x1x4xf32> to vector<16x16x4xf32>
    %21 = arith.mulf %18, %20 : vector<16x16x4xf32>
    %22 = arith.addf %16, %21 : vector<16x16x4xf32>
    %23 = vector.extract_strided_slice %9 {offsets = [2, 0], sizes = [1, 4], strides = [1, 1]} : vector<9x4xf32> to vector<1x4xf32>
    %c0_26 = arith.constant 0 : index
    %c2 = arith.constant 2 : index
    %c0_27 = arith.constant 0 : index
    %24 = vector.load %arg7[%c0_26, %c2, %c0_27] : memref<18x18x4xf32, #tpu.memory_space<vmem>>, vector<16x16x4xf32>
    %25 = vector.shape_cast %23 : vector<1x4xf32> to vector<1x1x4xf32>
    %26 = vector.broadcast %25 : vector<1x1x4xf32> to vector<16x16x4xf32>
    %27 = arith.mulf %24, %26 : vector<16x16x4xf32>
    %28 = arith.addf %22, %27 : vector<16x16x4xf32>
    %29 = vector.extract_strided_slice %9 {offsets = [3, 0], sizes = [1, 4], strides = [1, 1]} : vector<9x4xf32> to vector<1x4xf32>
    %c1_28 = arith.constant 1 : index
    %c0_29 = arith.constant 0 : index
    %c0_30 = arith.constant 0 : index
    %30 = vector.load %arg7[%c1_28, %c0_29, %c0_30] : memref<18x18x4xf32, #tpu.memory_space<vmem>>, vector<16x16x4xf32>
    %31 = vector.shape_cast %29 : vector<1x4xf32> to vector<1x1x4xf32>
    %32 = vector.broadcast %31 : vector<1x1x4xf32> to vector<16x16x4xf32>
    %33 = arith.mulf %30, %32 : vector<16x16x4xf32>
    %34 = arith.addf %28, %33 : vector<16x16x4xf32>
    %35 = vector.extract_strided_slice %9 {offsets = [4, 0], sizes = [1, 4], strides = [1, 1]} : vector<9x4xf32> to vector<1x4xf32>
    %c1_31 = arith.constant 1 : index
    %c1_32 = arith.constant 1 : index
    %c0_33 = arith.constant 0 : index
    %36 = vector.load %arg7[%c1_31, %c1_32, %c0_33] : memref<18x18x4xf32, #tpu.memory_space<vmem>>, vector<16x16x4xf32>
    %37 = vector.shape_cast %35 : vector<1x4xf32> to vector<1x1x4xf32>
    %38 = vector.broadcast %37 : vector<1x1x4xf32> to vector<16x16x4xf32>
    %39 = arith.mulf %36, %38 : vector<16x16x4xf32>
    %40 = arith.addf %34, %39 : vector<16x16x4xf32>
    %41 = vector.extract_strided_slice %9 {offsets = [5, 0], sizes = [1, 4], strides = [1, 1]} : vector<9x4xf32> to vector<1x4xf32>
    %c1_34 = arith.constant 1 : index
    %c2_35 = arith.constant 2 : index
    %c0_36 = arith.constant 0 : index
    %42 = vector.load %arg7[%c1_34, %c2_35, %c0_36] : memref<18x18x4xf32, #tpu.memory_space<vmem>>, vector<16x16x4xf32>
    %43 = vector.shape_cast %41 : vector<1x4xf32> to vector<1x1x4xf32>
    %44 = vector.broadcast %43 : vector<1x1x4xf32> to vector<16x16x4xf32>
    %45 = arith.mulf %42, %44 : vector<16x16x4xf32>
    %46 = arith.addf %40, %45 : vector<16x16x4xf32>
    %47 = vector.extract_strided_slice %9 {offsets = [6, 0], sizes = [1, 4], strides = [1, 1]} : vector<9x4xf32> to vector<1x4xf32>
    %c2_37 = arith.constant 2 : index
    %c0_38 = arith.constant 0 : index
    %c0_39 = arith.constant 0 : index
    %48 = vector.load %arg7[%c2_37, %c0_38, %c0_39] : memref<18x18x4xf32, #tpu.memory_space<vmem>>, vector<16x16x4xf32>
    %49 = vector.shape_cast %47 : vector<1x4xf32> to vector<1x1x4xf32>
    %50 = vector.broadcast %49 : vector<1x1x4xf32> to vector<16x16x4xf32>
    %51 = arith.mulf %48, %50 : vector<16x16x4xf32>
    %52 = arith.addf %46, %51 : vector<16x16x4xf32>
    %53 = vector.extract_strided_slice %9 {offsets = [7, 0], sizes = [1, 4], strides = [1, 1]} : vector<9x4xf32> to vector<1x4xf32>
    %c2_40 = arith.constant 2 : index
    %c1_41 = arith.constant 1 : index
    %c0_42 = arith.constant 0 : index
    %54 = vector.load %arg7[%c2_40, %c1_41, %c0_42] : memref<18x18x4xf32, #tpu.memory_space<vmem>>, vector<16x16x4xf32>
    %55 = vector.shape_cast %53 : vector<1x4xf32> to vector<1x1x4xf32>
    %56 = vector.broadcast %55 : vector<1x1x4xf32> to vector<16x16x4xf32>
    %57 = arith.mulf %54, %56 : vector<16x16x4xf32>
    %58 = arith.addf %52, %57 : vector<16x16x4xf32>
    %59 = vector.extract_strided_slice %9 {offsets = [8, 0], sizes = [1, 4], strides = [1, 1]} : vector<9x4xf32> to vector<1x4xf32>
    %c2_43 = arith.constant 2 : index
    %c2_44 = arith.constant 2 : index
    %c0_45 = arith.constant 0 : index
    %60 = vector.load %arg7[%c2_43, %c2_44, %c0_45] : memref<18x18x4xf32, #tpu.memory_space<vmem>>, vector<16x16x4xf32>
    %61 = vector.shape_cast %59 : vector<1x4xf32> to vector<1x1x4xf32>
    %62 = vector.broadcast %61 : vector<1x1x4xf32> to vector<16x16x4xf32>
    %63 = arith.mulf %60, %62 : vector<16x16x4xf32>
    %64 = arith.addf %58, %63 : vector<16x16x4xf32>
    %c0_46 = arith.constant 0 : index
    %c0_47 = arith.constant 0 : index
    %65 = vector.load %arg3[%c0_46, %c0_47] : memref<2x4xf32, #tpu.memory_space<vmem>>, vector<1x4xf32>
    %66 = vector.shape_cast %65 : vector<1x4xf32> to vector<1x1x4xf32>
    %67 = vector.broadcast %66 : vector<1x1x4xf32> to vector<16x16x4xf32>
    %68 = arith.mulf %64, %67 : vector<16x16x4xf32>
    %c1_48 = arith.constant 1 : index
    %c0_49 = arith.constant 0 : index
    %69 = vector.load %arg3[%c1_48, %c0_49] : memref<2x4xf32, #tpu.memory_space<vmem>>, vector<1x4xf32>
    %70 = vector.shape_cast %69 : vector<1x4xf32> to vector<1x1x4xf32>
    %71 = vector.broadcast %70 : vector<1x1x4xf32> to vector<16x16x4xf32>
    %72 = arith.addf %68, %71 : vector<16x16x4xf32>
    %73 = arith.negf %72 : vector<16x16x4xf32>
    %74 = math.exp %73 : vector<16x16x4xf32>
    %cst_50 = arith.constant 1.000000e+00 : f32
    %75 = vector.broadcast %cst_50 : f32 to vector<16x16x4xf32>
    %76 = arith.addf %75, %74 : vector<16x16x4xf32>
    %77 = arith.divf %75, %76 : vector<16x16x4xf32>
    %78 = arith.mulf %72, %77 : vector<16x16x4xf32>
    %79 = vector.shape_cast %78 : vector<16x16x4xf32> to vector<256x4xf32>
    %c0_51 = arith.constant 0 : index
    %c0_52 = arith.constant 0 : index
    %80 = vector.load %arg4[%c0_51, %c0_52] : memref<4x8xf32, #tpu.memory_space<vmem>>, vector<4x8xf32>
    %cst_53 = arith.constant dense<0.000000e+00> : vector<256x8xf32>
    %81 = tpu.matmul %79, %80, %cst_53 {dimension_numbers = #tpu.dot_dimension_numbers<[1], [0], [0], [1], [0, 0, 1, 1], [], []>} : vector<256x4xf32>, vector<4x8xf32>, vector<256x8xf32> -> vector<256x8xf32>
    %c0_54 = arith.constant 0 : index
    %c0_55 = arith.constant 0 : index
    %82 = vector.load %arg5[%c0_54, %c0_55] : memref<2x8xf32, #tpu.memory_space<vmem>>, vector<1x8xf32>
    %83 = vector.broadcast %82 : vector<1x8xf32> to vector<256x8xf32>
    %84 = arith.mulf %81, %83 : vector<256x8xf32>
    %c1_56 = arith.constant 1 : index
    %c0_57 = arith.constant 0 : index
    %85 = vector.load %arg5[%c1_56, %c0_57] : memref<2x8xf32, #tpu.memory_space<vmem>>, vector<1x8xf32>
    %86 = vector.broadcast %85 : vector<1x8xf32> to vector<256x8xf32>
    %87 = arith.addf %84, %86 : vector<256x8xf32>
    %88 = arith.negf %87 : vector<256x8xf32>
    %89 = math.exp %88 : vector<256x8xf32>
    %cst_58 = arith.constant 1.000000e+00 : f32
    %90 = vector.broadcast %cst_58 : f32 to vector<256x8xf32>
    %91 = arith.addf %90, %89 : vector<256x8xf32>
    %92 = arith.divf %90, %91 : vector<256x8xf32>
    %93 = arith.mulf %87, %92 : vector<256x8xf32>
    %94 = vector.shape_cast %93 : vector<256x8xf32> to vector<1x16x16x8xf32>
    %c0_59 = arith.constant 0 : index
    %c0_60 = arith.constant 0 : index
    %c0_61 = arith.constant 0 : index
    %c0_62 = arith.constant 0 : index
    %95 = vector.load %arg6[%c0_59, %c0_60, %c0_61, %c0_62] : memref<1x16x16x8xf32, #tpu.memory_space<vmem>>, vector<1x16x16x8xf32>
    tpu.vector_store %arg6[%c0_59, %c0_60, %c0_61, %c0_62], %94 {strides = array<i32>} : memref<1x16x16x8xf32, #tpu.memory_space<vmem>>, vector<1x16x16x8xf32>,
    return
  }
  func.func @transform_0(%arg0: i32) -> (i32, i32, i32, i32) {
    %c0_i32 = arith.constant 0 : i32
    %c0_i32_0 = arith.constant 0 : i32
    %c0_i32_1 = arith.constant 0 : i32
    %c0_i32_2 = arith.constant 0 : i32
    return %arg0, %c0_i32, %c0_i32_0, %c0_i32_1 : i32, i32, i32, i32
  }
  func.func @transform_1(%arg0: i32) -> (i32, i32) {
    %c0_i32 = arith.constant 0 : i32
    %c0_i32_0 = arith.constant 0 : i32
    %c0_i32_1 = arith.constant 0 : i32
    return %c0_i32, %c0_i32_0 : i32, i32
  }
  func.func @transform_2(%arg0: i32) -> (i32, i32) {
    %c0_i32 = arith.constant 0 : i32
    %c0_i32_0 = arith.constant 0 : i32
    %c0_i32_1 = arith.constant 0 : i32
    return %c0_i32, %c0_i32_0 : i32, i32
  }
  func.func @transform_3(%arg0: i32) -> (i32, i32) {
    %c0_i32 = arith.constant 0 : i32
    %c0_i32_0 = arith.constant 0 : i32
    %c0_i32_1 = arith.constant 0 : i32
    return %c0_i32, %c0_i32_0 : i32, i32
  }
  func.func @transform_4(%arg0: i32) -> (i32, i32) {
    %c0_i32 = arith.constant 0 : i32
    %c0_i32_0 = arith.constant 0 : i32
    %c0_i32_1 = arith.constant 0 : i32
    return %c0_i32, %c0_i32_0 : i32, i32
  }
  func.func @transform_5(%arg0: i32) -> (i32, i32, i32, i32) {
    %c0_i32 = arith.constant 0 : i32
    %c0_i32_0 = arith.constant 0 : i32
    %c0_i32_1 = arith.constant 0 : i32
    %c0_i32_2 = arith.constant 0 : i32
    return %arg0, %c0_i32, %c0_i32_0, %c0_i32_1 : i32, i32, i32, i32
  }
}

</mosaic_0001>

<llo_original>
// kernel: tpu_custom_call.1
$region0: #{tpu_custom_call.1}
  #allocation0 [shape = 'u32[]', space=smem, size = 0x4, offset = 0x4, fixed_abs, tag = 'smem constant byte address 0x4 - core index']
  #allocation1 [shape = 'u32[144,128]{1,0:T(1,128)}', space=vmem, size = 0x12000, scoped, tag = 'internal scratch']
  #allocation2 [shape = 'f32[18,18,4]{2,1,0:T(8,128)}', space=vmem, size = 0x36000, scoped, tag = 'scratch operand']
  %s0 = inlined_call_operand.vmem [shape: f32[2,16,16,4], index: 0, kind: input, shape index: {}]
  %s1 = inlined_call_operand.vmem [shape: f32[9,4], index: 1, kind: input, shape index: {}]
  %s2 = inlined_call_operand.vmem [shape: f32[2,4], index: 2, kind: input, shape index: {}]
  %s3 = inlined_call_operand.vmem [shape: f32[4,8], index: 3, kind: input, shape index: {}]
  %s4 = inlined_call_operand.vmem [shape: f32[2,8], index: 4, kind: input, shape index: {}]
  %s5 = inlined_call_operand.vmem [shape: f32[2,16,16,8], index: 5, kind: output, shape index: {}]
  %s6 = sld [smem:[#allocation0]]
  $region53: #{tpu_custom_call.1} parent=0
    _
  %s8 = ssub.s32 1, %s6
  %s9 = scalar_select 0, %s8, %s6
  loop: start=0, step=1, limit=4
  $region2: #{tpu_custom_call.1} parent=0 // loop_pre_header
    _
  $region3: #{tpu_custom_call.1} parent=0 // loop_header
    %s11 = sphi 0, %s15
    %p12 = scmp.ge.s32.totalorder %s11, 4
    %s21 = sphi 0, %s23
    %s24 = sphi 0, %s21
    %s25 = sphi 0, %s24
    %s41 = sphi 0, %s25
    %s45 = sphi 0, %s45
    %s47 = sphi 0, %s45
    %s48 = sphi 0, %s47
    %s62 = sphi 0, %s48
    %s66 = sphi 0, %s66
    %s68 = sphi 0, %s66
    %s69 = sphi 0, %s68
    %s83 = sphi 0, %s69
    %s87 = sphi 0, %s87
    %s89 = sphi 0, %s87
    %s90 = sphi 0, %s89
    %s104 = sphi 0, %s90
    %s108 = sphi 0, %s108
    %s110 = sphi 0, %s108
    %s111 = sphi 0, %s110
    %s125 = sphi 0, %s111
    %s131 = sphi 0, %s133
    %s134 = sphi 0, %s131
    %s135 = sphi 0, %s134
    %s151 = sphi 0, %s135
  $region4: #{tpu_custom_call.1} parent=0 // loop_header_branch
    %14 = sbr.rel (%p12) target = $region8
  $region5: #{tpu_custom_call.1} parent=0 // loop_body
    %s16 = ssub.s32 %s11, 1
    %s17 = ssub.s32 %s11, 2
    %s18 = sadd.s32 %s11, 1
    %s19 = ssub.s32 %s11, %s18
    %p20 = scmp.eq.s32.totalorder %s19, 0
    %s22 = sadd.s32 %s21, 1
    %s23 = scalar_select %p20, %s21, %s22
    %p26 = pneg %p20
    %p27 = scmp.eq.s32.totalorder %s11, 1
    %p28 = por %p26, %p27
    %p29 = scmp.ne.s32.totalorder %s21, %s24
    %p30 = scmp.eq.s32.totalorder %s11, 0
    %p31 = por %p29, %p30
    %p32 = scmp.ne.s32.totalorder %s21, %s24
    %p33 = scmp.eq.s32.totalorder %s16, 1
    %p34 = por %p32, %p33
    %p35 = scmp.ne.s32.totalorder %s24, %s25
    %p36 = scmp.eq.s32.totalorder %s16, 0
    %p37 = por %p35, %p36
    %p38 = scmp.ne.s32.totalorder %s24, %s25
    %p39 = scmp.eq.s32.totalorder %s17, 1
    %p40 = por %p38, %p39
    %p42 = scmp.ne.s32.totalorder %s25, %s41
    %p43 = scmp.eq.s32.totalorder %s17, 0
    %p44 = por %p42, %p43
    %s46 = sadd.s32 %s45, 1
    %p49 = scmp.eq.s32.totalorder %s11, 1
    %p50 = scmp.ne.s32.totalorder %s45, %s47
    %p51 = scmp.eq.s32.totalorder %s11, 0
    %p52 = por %p50, %p51
    %p53 = scmp.ne.s32.totalorder %s45, %s47
    %p54 = scmp.eq.s32.totalorder %s16, 1
    %p55 = por %p53, %p54
    %p56 = scmp.ne.s32.totalorder %s47, %s48
    %p57 = scmp.eq.s32.totalorder %s16, 0
    %p58 = por %p56, %p57
    %p59 = scmp.ne.s32.totalorder %s47, %s48
    %p60 = scmp.eq.s32.totalorder %s17, 1
    %p61 = por %p59, %p60
    %p63 = scmp.ne.s32.totalorder %s48, %s62
    %p64 = scmp.eq.s32.totalorder %s17, 0
    %p65 = por %p63, %p64
    %s67 = sadd.s32 %s66, 1
    %p70 = scmp.eq.s32.totalorder %s11, 1
    %p71 = scmp.ne.s32.totalorder %s66, %s68
    %p72 = scmp.eq.s32.totalorder %s11, 0
    %p73 = por %p71, %p72
    %p74 = scmp.ne.s32.totalorder %s66, %s68
    %p75 = scmp.eq.s32.totalorder %s16, 1
    %p76 = por %p74, %p75
    %p77 = scmp.ne.s32.totalorder %s68, %s69
    %p78 = scmp.eq.s32.totalorder %s16, 0
    %p79 = por %p77, %p78
    %p80 = scmp.ne.s32.totalorder %s68, %s69
    %p81 = scmp.eq.s32.totalorder %s17, 1
    %p82 = por %p80, %p81
    %p84 = scmp.ne.s32.totalorder %s69, %s83
    %p85 = scmp.eq.s32.totalorder %s17, 0
    %p86 = por %p84, %p85
    %s88 = sadd.s32 %s87, 1
    %p91 = scmp.eq.s32.totalorder %s11, 1
    %p92 = scmp.ne.s32.totalorder %s87, %s89
    %p93 = scmp.eq.s32.totalorder %s11, 0
    %p94 = por %p92, %p93
    %p95 = scmp.ne.s32.totalorder %s87, %s89
    %p96 = scmp.eq.s32.totalorder %s16, 1
    %p97 = por %p95, %p96
    %p98 = scmp.ne.s32.totalorder %s89, %s90
    %p99 = scmp.eq.s32.totalorder %s16, 0
    %p100 = por %p98, %p99
    %p101 = scmp.ne.s32.totalorder %s89, %s90
    %p102 = scmp.eq.s32.totalorder %s17, 1
    %p103 = por %p101, %p102
    %p105 = scmp.ne.s32.totalorder %s90, %s104
    %p106 = scmp.eq.s32.totalorder %s17, 0
    %p107 = por %p105, %p106
    %s109 = sadd.s32 %s108, 1
    %p112 = scmp.eq.s32.totalorder %s11, 1
    %p113 = scmp.ne.s32.totalorder %s108, %s110
    %p114 = scmp.eq.s32.totalorder %s11, 0
    %p115 = por %p113, %p114
    %p116 = scmp.ne.s32.totalorder %s108, %s110
    %p117 = scmp.eq.s32.totalorder %s16, 1
    %p118 = por %p116, %p117
    %p119 = scmp.ne.s32.totalorder %s110, %s111
    %p120 = scmp.eq.s32.totalorder %s16, 0
    %p121 = por %p119, %p120
    %p122 = scmp.ne.s32.totalorder %s110, %s111
    %p123 = scmp.eq.s32.totalorder %s17, 1
    %p124 = por %p122, %p123
    %p126 = scmp.ne.s32.totalorder %s111, %s125
    %p127 = scmp.eq.s32.totalorder %s17, 0
    %p128 = por %p126, %p127
    %s129 = ssub.s32 %s11, %s18
    %p130 = scmp.eq.s32.totalorder %s129, 0
    %s132 = sadd.s32 %s131, 1
    %s133 = scalar_select %p130, %s131, %s132
    %p136 = pneg %p130
    %p137 = scmp.eq.s32.totalorder %s11, 1
    %p138 = por %p136, %p137
    %p139 = scmp.ne.s32.totalorder %s131, %s134
    %p140 = scmp.eq.s32.totalorder %s11, 0
    %p141 = por %p139, %p140
    %p142 = scmp.ne.s32.totalorder %s131, %s134
    %p143 = scmp.eq.s32.totalorder %s16, 1
    %p144 = por %p142, %p143
    %p145 = scmp.ne.s32.totalorder %s134, %s135
    %p146 = scmp.eq.s32.totalorder %s16, 0
    %p147 = por %p145, %p146
    %p148 = scmp.ne.s32.totalorder %s134, %s135
    %p149 = scmp.eq.s32.totalorder %s17, 1
    %p150 = por %p148, %p149
    %p152 = scmp.ne.s32.totalorder %s135, %s151
    %p153 = scmp.eq.s32.totalorder %s17, 0
    %p154 = por %p152, %p153
    %p155 = scmp.le.s32.totalorder 1, %s11
    %p156 = scmp.lt.s32.totalorder %s11, 3
    %p157 = pnand %p155, %p156
    %p158 = pneg %p157
    // Predicated region
    $region9: #{tpu_custom_call.1} parent=5 // pred_check
      _
    $region10: #{tpu_custom_call.1} parent=5 // pred_check_branch
      %160 = sbr.rel (%p157) target = $region12
    $region11: #{tpu_custom_call.1} parent=5 // pred_region
      %s161 = ssub.s32 %s11, 1
      // Predicated region
      $region13: #{tpu_custom_call.1} parent=11 // pred_check
        %p162 = pneg %p58
      $region14: #{tpu_custom_call.1} parent=11 // pred_check_branch
        %164 = sbr.rel (%p162) target = $region16
      $region15: #{tpu_custom_call.1} parent=11 // pred_region
        _
      $region16: #{tpu_custom_call.1} parent=11 // pred_fallthru
        _
      // Predicated region
      $region17: #{tpu_custom_call.1} parent=11 // pred_check
        %p165 = pneg %p79
      $region18: #{tpu_custom_call.1} parent=11 // pred_check_branch
        %167 = sbr.rel (%p165) target = $region20
      $region19: #{tpu_custom_call.1} parent=11 // pred_region
        _
      $region20: #{tpu_custom_call.1} parent=11 // pred_fallthru
        _
      // Predicated region
      $region21: #{tpu_custom_call.1} parent=11 // pred_check
        %p168 = pneg %p100
      $region22: #{tpu_custom_call.1} parent=11 // pred_check_branch
        %170 = sbr.rel (%p168) target = $region24
      $region23: #{tpu_custom_call.1} parent=11 // pred_region
        _
      $region24: #{tpu_custom_call.1} parent=11 // pred_fallthru
        _
      // Predicated region
      $region25: #{tpu_custom_call.1} parent=11 // pred_check
        %p171 = pneg %p121
      $region26: #{tpu_custom_call.1} parent=11 // pred_check_branch
        %173 = sbr.rel (%p171) target = $region28
      $region27: #{tpu_custom_call.1} parent=11 // pred_region
        _
      $region28: #{tpu_custom_call.1} parent=11 // pred_fallthru
        _
    $region12: #{tpu_custom_call.1} parent=5 // pred_fallthru
      _
    %p174 = scmp.lt.s32.totalorder %s11, 2
    // Predicated region
    $region29: #{tpu_custom_call.1} parent=5 // pred_check
      %p175 = pneg %p174
    $region30: #{tpu_custom_call.1} parent=5 // pred_check_branch
      %177 = sbr.rel (%p175) target = $region32
    $region31: #{tpu_custom_call.1} parent=5 // pred_region
      // Predicated region
      $region33: #{tpu_custom_call.1} parent=31 // pred_check
        %p178 = pneg %p31
      $region34: #{tpu_custom_call.1} parent=31 // pred_check_branch
        %180 = sbr.rel (%p178) target = $region36
      $region35: #{tpu_custom_call.1} parent=31 // pred_region
        %p181 = scmp.lt.s32.totalorder %s11, 1
        %s182 = scalar_select %p181, %s11, 1
        %s183 = smul.addr %s182, 32
        %s184 = smul.addr %s183, 8
        %s185 = scalar_lea.vmem %s0, %s184
      $region36: #{tpu_custom_call.1} parent=31 // pred_fallthru
        _
    $region32: #{tpu_custom_call.1} parent=5 // pred_fallthru
      _
    %p186 = scmp.le.s32.totalorder 1, %s11
    %p187 = scmp.lt.s32.totalorder %s11, 3
    %p188 = pnand %p186, %p187
    %p189 = pneg %p188
    // Predicated region
    $region37: #{tpu_custom_call.1} parent=5 // pred_check
      _
    $region38: #{tpu_custom_call.1} parent=5 // pred_check_branch
      %191 = sbr.rel (%p188) target = $region40
    $region39: #{tpu_custom_call.1} parent=5 // pred_region
      %s192 = ssub.s32 %s11, 1
      %p193 = scmp.lt.s32.totalorder %s16, 1
      %s194 = scalar_select %p193, %s16, 1
      %s195 = smul.addr %s194, 32
      %s196 = smul.addr %s195, 8
      %s197 = scalar_lea.vmem %s0, %s196
      %p198 = pneg %p37
      %p199 = pneg %p34
      %p200 = pneg %p58
      %p201 = pneg %p55
      %p202 = pneg %p79
      %p203 = pneg %p76
      %p204 = pneg %p100
      %p205 = pneg %p97
      %p206 = pneg %p121
      %p207 = pneg %p118
      %p208 = pneg %p147
      %p209 = pneg %p144
      %p210 = scmp.lt.s32.totalorder %s16, 1
      %s211 = scalar_select %p210, %s16, 1
      %s212 = smul.addr %s211, 32
      %s213 = smul.addr %s212, 8
      %s214 = scalar_lea.vmem %s5, %s213
      %p215 = scmp.lt.s32.totalorder %s16, 1
      %s216 = scalar_select %p215, %s16, 1
      %s217 = smul.addr %s216, 32
      %s218 = smul.addr %s217, 8
      %s219 = scalar_lea.vmem %s0, %s218
      %p220 = scmp.lt.s32.totalorder %s16, 1
      %s221 = scalar_select %p220, %s16, 1
      %s222 = smul.addr %s221, 32
      %s223 = smul.addr %s222, 8
      %s224 = scalar_lea.vmem %s5, %s223
      %vm225 = vcmask 31744
      %226 = vst.msk [vmem:[#allocation2] sm:$0xff] %vm225, 0.0
      %227 = vst.msk [vmem:[#allocation2 + $0x8] sm:$0xff] %vm225, 0.0
      %vm228 = vcmask 25600
      %229 = vst.msk [vmem:[#allocation2 + $0x10] sm:$0x3] %vm228, 0.0
      %s230 = scalar_lea.vmem [#allocation2], 408
      %231 = vst.msk [vmem:[%s230] sm:$0xff] %vm225, 0.0
      %232 = vst.msk [vmem:[%s230 + $0x8] sm:$0xff] %vm225, 0.0
      %233 = vst.msk [vmem:[%s230 + $0x10] sm:$0x3] %vm228, 0.0
      %vm234 = vcmask 24576
      %235 = vst.msk [vmem:[#allocation2] sm:$0x1] %vm234, 0.0
      %236 = vst.msk [vmem:[#allocation2 + $0x18] sm:$0x1] %vm234, 0.0
      %237 = vst.msk [vmem:[#allocation2 + $0x30] sm:$0x1] %vm234, 0.0
      %238 = vst.msk [vmem:[#allocation2 + $0x48] sm:$0x1] %vm234, 0.0
      %239 = vst.msk [vmem:[#allocation2 + $0x60] sm:$0x1] %vm234, 0.0
      %240 = vst.msk [vmem:[#allocation2 + $0x78] sm:$0x1] %vm234, 0.0
      %241 = vst.msk [vmem:[#allocation2 + $0x90] sm:$0x1] %vm234, 0.0
      %242 = vst.msk [vmem:[#allocation2 + $0xa8] sm:$0x1] %vm234, 0.0
      %243 = vst.msk [vmem:[#allocation2 + $0xc0] sm:$0x1] %vm234, 0.0
      %244 = vst.msk [vmem:[#allocation2 + $0xd8] sm:$0x1] %vm234, 0.0
      %245 = vst.msk [vmem:[#allocation2 + $0xf0] sm:$0x1] %vm234, 0.0
      %246 = vst.msk [vmem:[#allocation2 + $0x108] sm:$0x1] %vm234, 0.0
      %247 = vst.msk [vmem:[#allocation2 + $0x120] sm:$0x1] %vm234, 0.0
      %248 = vst.msk [vmem:[#allocation2 + $0x138] sm:$0x1] %vm234, 0.0
      %249 = vst.msk [vmem:[#allocation2 + $0x150] sm:$0x1] %vm234, 0.0
      %250 = vst.msk [vmem:[#allocation2 + $0x168] sm:$0x1] %vm234, 0.0
      %251 = vst.msk [vmem:[#allocation2 + $0x180] sm:$0x1] %vm234, 0.0
      %252 = vst.msk [vmem:[#allocation2 + $0x198] sm:$0x1] %vm234, 0.0
      %253 = vst.msk [vmem:[#allocation2 + $0x11] sm:$0x1] %vm234, 0.0
      %254 = vst.msk [vmem:[#allocation2 + $0x29] sm:$0x1] %vm234, 0.0
      %255 = vst.msk [vmem:[#allocation2 + $0x41] sm:$0x1] %vm234, 0.0
      %256 = vst.msk [vmem:[#allocation2 + $0x59] sm:$0x1] %vm234, 0.0
      %257 = vst.msk [vmem:[#allocation2 + $0x71] sm:$0x1] %vm234, 0.0
      %258 = vst.msk [vmem:[#allocation2 + $0x89] sm:$0x1] %vm234, 0.0
      %259 = vst.msk [vmem:[#allocation2 + $0xa1] sm:$0x1] %vm234, 0.0
      %260 = vst.msk [vmem:[#allocation2 + $0xb9] sm:$0x1] %vm234, 0.0
      %261 = vst.msk [vmem:[#allocation2 + $0xd1] sm:$0x1] %vm234, 0.0
      %262 = vst.msk [vmem:[#allocation2 + $0xe9] sm:$0x1] %vm234, 0.0
      %263 = vst.msk [vmem:[#allocation2 + $0x101] sm:$0x1] %vm234, 0.0
      %264 = vst.msk [vmem:[#allocation2 + $0x119] sm:$0x1] %vm234, 0.0
      %265 = vst.msk [vmem:[#allocation2 + $0x131] sm:$0x1] %vm234, 0.0
      %266 = vst.msk [vmem:[#allocation2 + $0x149] sm:$0x1] %vm234, 0.0
      %267 = vst.msk [vmem:[#allocation2 + $0x161] sm:$0x1] %vm234, 0.0
      %268 = vst.msk [vmem:[#allocation2 + $0x179] sm:$0x1] %vm234, 0.0
      %269 = vst.msk [vmem:[#allocation2 + $0x191] sm:$0x1] %vm234, 0.0
      %270 = vst.msk [vmem:[#allocation2 + $0x1a9] sm:$0x1] %vm234, 0.0
      %v271 = vld [vmem:[%s219] sm:$0xff]
      %v272 = vld [vmem:[%s219 + $0x8] sm:$0xff]
      %v273 = vld [vmem:[%s219 + $0x10] sm:$0xff]
      %v274 = vld [vmem:[%s219 + $0x18] sm:$0xff]
      %v275 = vld [vmem:[%s219 + $0x20] sm:$0xff]
      %v276 = vld [vmem:[%s219 + $0x28] sm:$0xff]
      %v277 = vld [vmem:[%s219 + $0x30] sm:$0xff]
      %v278 = vld [vmem:[%s219 + $0x38] sm:$0xff]
      %v279 = vld [vmem:[%s219 + $0x40] sm:$0xff]
      %v280 = vld [vmem:[%s219 + $0x48] sm:$0xff]
      %v281 = vld [vmem:[%s219 + $0x50] sm:$0xff]
      %v282 = vld [vmem:[%s219 + $0x58] sm:$0xff]
      %v283 = vld [vmem:[%s219 + $0x60] sm:$0xff]
      %v284 = vld [vmem:[%s219 + $0x68] sm:$0xff]
      %v285 = vld [vmem:[%s219 + $0x70] sm:$0xff]
      %v286 = vld [vmem:[%s219 + $0x78] sm:$0xff]
      %v287 = vld [vmem:[%s219 + $0x80] sm:$0xff]
      %v288 = vld [vmem:[%s219 + $0x88] sm:$0xff]
      %v289 = vld [vmem:[%s219 + $0x90] sm:$0xff]
      %v290 = vld [vmem:[%s219 + $0x98] sm:$0xff]
      %v291 = vld [vmem:[%s219 + $0xa0] sm:$0xff]
      %v292 = vld [vmem:[%s219 + $0xa8] sm:$0xff]
      %v293 = vld [vmem:[%s219 + $0xb0] sm:$0xff]
      %v294 = vld [vmem:[%s219 + $0xb8] sm:$0xff]
      %v295 = vld [vmem:[%s219 + $0xc0] sm:$0xff]
      %v296 = vld [vmem:[%s219 + $0xc8] sm:$0xff]
      %v297 = vld [vmem:[%s219 + $0xd0] sm:$0xff]
      %v298 = vld [vmem:[%s219 + $0xd8] sm:$0xff]
      %v299 = vld [vmem:[%s219 + $0xe0] sm:$0xff]
      %v300 = vld [vmem:[%s219 + $0xe8] sm:$0xff]
      %v301 = vld [vmem:[%s219 + $0xf0] sm:$0xff]
      %v302 = vld [vmem:[%s219 + $0xf8] sm:$0xff]
      %s303 = scalar_lea.vmem [#allocation2], 24
      %304 = vst.msk [vmem:[%s303 + $0x1] sm:$0xff] %vm225, %v271
      %305 = vst.msk [vmem:[%s303 + $0x9] sm:$0xff] %vm225, %v272
      %306 = vst.msk [vmem:[%s303 + $0x19] sm:$0xff] %vm225, %v273
      %307 = vst.msk [vmem:[%s303 + $0x21] sm:$0xff] %vm225, %v274
      %308 = vst.msk [vmem:[%s303 + $0x31] sm:$0xff] %vm225, %v275
      %309 = vst.msk [vmem:[%s303 + $0x39] sm:$0xff] %vm225, %v276
      %310 = vst.msk [vmem:[%s303 + $0x49] sm:$0xff] %vm225, %v277
      %311 = vst.msk [vmem:[%s303 + $0x51] sm:$0xff] %vm225, %v278
      %312 = vst.msk [vmem:[%s303 + $0x61] sm:$0xff] %vm225, %v279
      %313 = vst.msk [vmem:[%s303 + $0x69] sm:$0xff] %vm225, %v280
      %314 = vst.msk [vmem:[%s303 + $0x79] sm:$0xff] %vm225, %v281
      %315 = vst.msk [vmem:[%s303 + $0x81] sm:$0xff] %vm225, %v282
      %316 = vst.msk [vmem:[%s303 + $0x91] sm:$0xff] %vm225, %v283
      %317 = vst.msk [vmem:[%s303 + $0x99] sm:$0xff] %vm225, %v284
      %318 = vst.msk [vmem:[%s303 + $0xa9] sm:$0xff] %vm225, %v285
      %319 = vst.msk [vmem:[%s303 + $0xb1] sm:$0xff] %vm225, %v286
      %320 = vst.msk [vmem:[%s303 + $0xc1] sm:$0xff] %vm225, %v287
      %321 = vst.msk [vmem:[%s303 + $0xc9] sm:$0xff] %vm225, %v288
      %322 = vst.msk [vmem:[%s303 + $0xd9] sm:$0xff] %vm225, %v289
      %323 = vst.msk [vmem:[%s303 + $0xe1] sm:$0xff] %vm225, %v290
      %324 = vst.msk [vmem:[%s303 + $0xf1] sm:$0xff] %vm225, %v291
      %325 = vst.msk [vmem:[%s303 + $0xf9] sm:$0xff] %vm225, %v292
      %326 = vst.msk [vmem:[%s303 + $0x109] sm:$0xff] %vm225, %v293
      %327 = vst.msk [vmem:[%s303 + $0x111] sm:$0xff] %vm225, %v294
      %328 = vst.msk [vmem:[%s303 + $0x121] sm:$0xff] %vm225, %v295
      %329 = vst.msk [vmem:[%s303 + $0x129] sm:$0xff] %vm225, %v296
      %330 = vst.msk [vmem:[%s303 + $0x139] sm:$0xff] %vm225, %v297
      %331 = vst.msk [vmem:[%s303 + $0x141] sm:$0xff] %vm225, %v298
      %332 = vst.msk [vmem:[%s303 + $0x151] sm:$0xff] %vm225, %v299
      %333 = vst.msk [vmem:[%s303 + $0x159] sm:$0xff] %vm225, %v300
      %334 = vst.msk [vmem:[%s303 + $0x169] sm:$0xff] %vm225, %v301
      %335 = vst.msk [vmem:[%s303 + $0x171] sm:$0xff] %vm225, %v302
      %v336 = vld [vmem:[%s1] sm:$0xff]
      %v337 = vld [vmem:[%s1 + $0x8] sm:$0x1]
      %v338 = vld [vmem:[#allocation2] sm:$0xff]
      %v339 = vld [vmem:[#allocation2 + $0x8] sm:$0xff]
      %v340 = vld [vmem:[#allocation2 + $0x18] sm:$0xff]
      %v341 = vld [vmem:[#allocation2 + $0x20] sm:$0xff]
      %v342 = vld [vmem:[#allocation2 + $0x30] sm:$0xff]
      %v343 = vld [vmem:[#allocation2 + $0x38] sm:$0xff]
      %v344 = vld [vmem:[#allocation2 + $0x48] sm:$0xff]
      %v345 = vld [vmem:[#allocation2 + $0x50] sm:$0xff]
      %v346 = vld [vmem:[#allocation2 + $0x60] sm:$0xff]
      %v347 = vld [vmem:[#allocation2 + $0x68] sm:$0xff]
      %v348 = vld [vmem:[#allocation2 + $0x78] sm:$0xff]
      %v349 = vld [vmem:[#allocation2 + $0x80] sm:$0xff]
      %v350 = vld [vmem:[#allocation2 + $0x90] sm:$0xff]
      %v351 = vld [vmem:[#allocation2 + $0x98] sm:$0xff]
      %v352 = vld [vmem:[#allocation2 + $0xa8] sm:$0xff]
      %v353 = vld [vmem:[#allocation2 + $0xb0] sm:$0xff]
      %v354 = vld [vmem:[#allocation2 + $0xc0] sm:$0xff]
      %v355 = vld [vmem:[#allocation2 + $0xc8] sm:$0xff]
      %v356 = vld [vmem:[#allocation2 + $0xd8] sm:$0xff]
      %v357 = vld [vmem:[#allocation2 + $0xe0] sm:$0xff]
      %v358 = vld [vmem:[#allocation2 + $0xf0] sm:$0xff]
      %v359 = vld [vmem:[#allocation2 + $0xf8] sm:$0xff]
      %v360 = vld [vmem:[#allocation2 + $0x108] sm:$0xff]
      %v361 = vld [vmem:[#allocation2 + $0x110] sm:$0xff]
      %v362 = vld [vmem:[#allocation2 + $0x120] sm:$0xff]
      %v363 = vld [vmem:[#allocation2 + $0x128] sm:$0xff]
      %v364 = vld [vmem:[#allocation2 + $0x138] sm:$0xff]
      %v365 = vld [vmem:[#allocation2 + $0x140] sm:$0xff]
      %v366 = vld [vmem:[#allocation2 + $0x150] sm:$0xff]
      %v367 = vld [vmem:[#allocation2 + $0x158] sm:$0xff]
      %v368 = vld [vmem:[#allocation2 + $0x168] sm:$0xff]
      %v369 = vld [vmem:[#allocation2 + $0x170] sm:$0xff]
      %v370 = vlaneseq
      %v371 = vshrl.u32 %v370, 7
      %v372 = vsub.s32 0, %v371
      %v373 = vrot.slane %v336, %v372
      %v374 = vmul.f32 %v338, %v373
      %v375 = vmul.f32 %v339, %v373
      %v376 = vmul.f32 %v340, %v373
      %v377 = vmul.f32 %v341, %v373
      %v378 = vmul.f32 %v342, %v373
      %v379 = vmul.f32 %v343, %v373
      %v380 = vmul.f32 %v344, %v373
      %v381 = vmul.f32 %v345, %v373
      %v382 = vmul.f32 %v346, %v373
      %v383 = vmul.f32 %v347, %v373
      %v384 = vmul.f32 %v348, %v373
      %v385 = vmul.f32 %v349, %v373
      %v386 = vmul.f32 %v350, %v373
      %v387 = vmul.f32 %v351, %v373
      %v388 = vmul.f32 %v352, %v373
      %v389 = vmul.f32 %v353, %v373
      %v390 = vmul.f32 %v354, %v373
      %v391 = vmul.f32 %v355, %v373
      %v392 = vmul.f32 %v356, %v373
      %v393 = vmul.f32 %v357, %v373
      %v394 = vmul.f32 %v358, %v373
      %v395 = vmul.f32 %v359, %v373
      %v396 = vmul.f32 %v360, %v373
      %v397 = vmul.f32 %v361, %v373
      %v398 = vmul.f32 %v362, %v373
      %v399 = vmul.f32 %v363, %v373
      %v400 = vmul.f32 %v364, %v373
      %v401 = vmul.f32 %v365, %v373
      %v402 = vmul.f32 %v366, %v373
      %v403 = vmul.f32 %v367, %v373
      %v404 = vmul.f32 %v368, %v373
      %v405 = vmul.f32 %v369, %v373
      %v406 = vadd.f32 %v374, 0.0
      %v407 = vadd.f32 %v375, 0.0
      %v408 = vadd.f32 %v376, 0.0
      %v409 = vadd.f32 %v377, 0.0
      %v410 = vadd.f32 %v378, 0.0
      %v411 = vadd.f32 %v379, 0.0
      %v412 = vadd.f32 %v380, 0.0
      %v413 = vadd.f32 %v381, 0.0
      %v414 = vadd.f32 %v382, 0.0
      %v415 = vadd.f32 %v383, 0.0
      %v416 = vadd.f32 %v384, 0.0
      %v417 = vadd.f32 %v385, 0.0
      %v418 = vadd.f32 %v386, 0.0
      %v419 = vadd.f32 %v387, 0.0
      %v420 = vadd.f32 %v388, 0.0
      %v421 = vadd.f32 %v389, 0.0
      %v422 = vadd.f32 %v390, 0.0
      %v423 = vadd.f32 %v391, 0.0
      %v424 = vadd.f32 %v392, 0.0
      %v425 = vadd.f32 %v393, 0.0
      %v426 = vadd.f32 %v394, 0.0
      %v427 = vadd.f32 %v395, 0.0
      %v428 = vadd.f32 %v396, 0.0
      %v429 = vadd.f32 %v397, 0.0
      %v430 = vadd.f32 %v398, 0.0
      %v431 = vadd.f32 %v399, 0.0
      %v432 = vadd.f32 %v400, 0.0
      %v433 = vadd.f32 %v401, 0.0
      %v434 = vadd.f32 %v402, 0.0
      %v435 = vadd.f32 %v403, 0.0
      %v436 = vadd.f32 %v404, 0.0
      %v437 = vadd.f32 %v405, 0.0
      %v438 = vld [vmem:[#allocation2 + $0x1] sm:$0xff]
      %v439 = vld [vmem:[#allocation2 + $0x9] sm:$0xff]
      %v440 = vld [vmem:[#allocation2 + $0x19] sm:$0xff]
      %v441 = vld [vmem:[#allocation2 + $0x21] sm:$0xff]
      %v442 = vld [vmem:[#allocation2 + $0x31] sm:$0xff]
      %v443 = vld [vmem:[#allocation2 + $0x39] sm:$0xff]
      %v444 = vld [vmem:[#allocation2 + $0x49] sm:$0xff]
      %v445 = vld [vmem:[#allocation2 + $0x51] sm:$0xff]
      %v446 = vld [vmem:[#allocation2 + $0x61] sm:$0xff]
      %v447 = vld [vmem:[#allocation2 + $0x69] sm:$0xff]
      %v448 = vld [vmem:[#allocation2 + $0x79] sm:$0xff]
      %v449 = vld [vmem:[#allocation2 + $0x81] sm:$0xff]
      %v450 = vld [vmem:[#allocation2 + $0x91] sm:$0xff]
      %v451 = vld [vmem:[#allocation2 + $0x99] sm:$0xff]
      %v452 = vld [vmem:[#allocation2 + $0xa9] sm:$0xff]
      %v453 = vld [vmem:[#allocation2 + $0xb1] sm:$0xff]
      %v454 = vld [vmem:[#allocation2 + $0xc1] sm:$0xff]
      %v455 = vld [vmem:[#allocation2 + $0xc9] sm:$0xff]
      %v456 = vld [vmem:[#allocation2 + $0xd9] sm:$0xff]
      %v457 = vld [vmem:[#allocation2 + $0xe1] sm:$0xff]
      %v458 = vld [vmem:[#allocation2 + $0xf1] sm:$0xff]
      %v459 = vld [vmem:[#allocation2 + $0xf9] sm:$0xff]
      %v460 = vld [vmem:[#allocation2 + $0x109] sm:$0xff]
      %v461 = vld [vmem:[#allocation2 + $0x111] sm:$0xff]
      %v462 = vld [vmem:[#allocation2 + $0x121] sm:$0xff]
      %v463 = vld [vmem:[#allocation2 + $0x129] sm:$0xff]
      %v464 = vld [vmem:[#allocation2 + $0x139] sm:$0xff]
      %v465 = vld [vmem:[#allocation2 + $0x141] sm:$0xff]
      %v466 = vld [vmem:[#allocation2 + $0x151] sm:$0xff]
      %v467 = vld [vmem:[#allocation2 + $0x159] sm:$0xff]
      %v468 = vld [vmem:[#allocation2 + $0x169] sm:$0xff]
      %v469 = vld [vmem:[#allocation2 + $0x171] sm:$0xff]
      %v470 = vlaneseq
      %v471 = vshrl.u32 %v470, 7
      %v472 = vsub.s32 1, %v471
      %v473 = vrot.slane %v336, %v472
      %v474 = vmul.f32 %v438, %v473
      %v475 = vmul.f32 %v439, %v473
      %v476 = vmul.f32 %v440, %v473
      %v477 = vmul.f32 %v441, %v473
      %v478 = vmul.f32 %v442, %v473
      %v479 = vmul.f32 %v443, %v473
      %v480 = vmul.f32 %v444, %v473
      %v481 = vmul.f32 %v445, %v473
      %v482 = vmul.f32 %v446, %v473
      %v483 = vmul.f32 %v447, %v473
      %v484 = vmul.f32 %v448, %v473
      %v485 = vmul.f32 %v449, %v473
      %v486 = vmul.f32 %v450, %v473
      %v487 = vmul.f32 %v451, %v473
      %v488 = vmul.f32 %v452, %v473
      %v489 = vmul.f32 %v453, %v473
      %v490 = vmul.f32 %v454, %v473
      %v491 = vmul.f32 %v455, %v473
      %v492 = vmul.f32 %v456, %v473
      %v493 = vmul.f32 %v457, %v473
      %v494 = vmul.f32 %v458, %v473
      %v495 = vmul.f32 %v459, %v473
      %v496 = vmul.f32 %v460, %v473
      %v497 = vmul.f32 %v461, %v473
      %v498 = vmul.f32 %v462, %v473
      %v499 = vmul.f32 %v463, %v473
      %v500 = vmul.f32 %v464, %v473
      %v501 = vmul.f32 %v465, %v473
      %v502 = vmul.f32 %v466, %v473
      %v503 = vmul.f32 %v467, %v473
      %v504 = vmul.f32 %v468, %v473
      %v505 = vmul.f32 %v469, %v473
      %v506 = vadd.f32 %v406, %v474
      %v507 = vadd.f32 %v407, %v475
      %v508 = vadd.f32 %v408, %v476
      %v509 = vadd.f32 %v409, %v477
      %v510 = vadd.f32 %v410, %v478
      %v511 = vadd.f32 %v411, %v479
      %v512 = vadd.f32 %v412, %v480
      %v513 = vadd.f32 %v413, %v481
      %v514 = vadd.f32 %v414, %v482
      %v515 = vadd.f32 %v415, %v483
      %v516 = vadd.f32 %v416, %v484
      %v517 = vadd.f32 %v417, %v485
      %v518 = vadd.f32 %v418, %v486
      %v519 = vadd.f32 %v419, %v487
      %v520 = vadd.f32 %v420, %v488
      %v521 = vadd.f32 %v421, %v489
      %v522 = vadd.f32 %v422, %v490
      %v523 = vadd.f32 %v423, %v491
      %v524 = vadd.f32 %v424, %v492
      %v525 = vadd.f32 %v425, %v493
      %v526 = vadd.f32 %v426, %v494
      %v527 = vadd.f32 %v427, %v495
      %v528 = vadd.f32 %v428, %v496
      %v529 = vadd.f32 %v429, %v497
      %v530 = vadd.f32 %v430, %v498
      %v531 = vadd.f32 %v431, %v499
      %v532 = vadd.f32 %v432, %v500
      %v533 = vadd.f32 %v433, %v501
      %v534 = vadd.f32 %v434, %v502
      %v535 = vadd.f32 %v435, %v503
      %v536 = vadd.f32 %v436, %v504
      %v537 = vadd.f32 %v437, %v505
      %v538 = vld [vmem:[#allocation2 + $0x2] sm:$0xff]
      %v539 = vld [vmem:[#allocation2 + $0xa] sm:$0xff]
      %v540 = vld [vmem:[#allocation2 + $0x1a] sm:$0xff]
      %v541 = vld [vmem:[#allocation2 + $0x22] sm:$0xff]
      %v542 = vld [vmem:[#allocation2 + $0x32] sm:$0xff]
      %v543 = vld [vmem:[#allocation2 + $0x3a] sm:$0xff]
      %v544 = vld [vmem:[#allocation2 + $0x4a] sm:$0xff]
      %v545 = vld [vmem:[#allocation2 + $0x52] sm:$0xff]
      %v546 = vld [vmem:[#allocation2 + $0x62] sm:$0xff]
      %v547 = vld [vmem:[#allocation2 + $0x6a] sm:$0xff]
      %v548 = vld [vmem:[#allocation2 + $0x7a] sm:$0xff]
      %v549 = vld [vmem:[#allocation2 + $0x82] sm:$0xff]
      %v550 = vld [vmem:[#allocation2 + $0x92] sm:$0xff]
      %v551 = vld [vmem:[#allocation2 + $0x9a] sm:$0xff]
      %v552 = vld [vmem:[#allocation2 + $0xaa] sm:$0xff]
      %v553 = vld [vmem:[#allocation2 + $0xb2] sm:$0xff]
      %v554 = vld [vmem:[#allocation2 + $0xc2] sm:$0xff]
      %v555 = vld [vmem:[#allocation2 + $0xca] sm:$0xff]
      %v556 = vld [vmem:[#allocation2 + $0xda] sm:$0xff]
      %v557 = vld [vmem:[#allocation2 + $0xe2] sm:$0xff]
      %v558 = vld [vmem:[#allocation2 + $0xf2] sm:$0xff]
      %v559 = vld [vmem:[#allocation2 + $0xfa] sm:$0xff]
      %v560 = vld [vmem:[#allocation2 + $0x10a] sm:$0xff]
      %v561 = vld [vmem:[#allocation2 + $0x112] sm:$0xff]
      %v562 = vld [vmem:[#allocation2 + $0x122] sm:$0xff]
      %v563 = vld [vmem:[#allocation2 + $0x12a] sm:$0xff]
      %v564 = vld [vmem:[#allocation2 + $0x13a] sm:$0xff]
      %v565 = vld [vmem:[#allocation2 + $0x142] sm:$0xff]
      %v566 = vld [vmem:[#allocation2 + $0x152] sm:$0xff]
      %v567 = vld [vmem:[#allocation2 + $0x15a] sm:$0xff]
      %v568 = vld [vmem:[#allocation2 + $0x16a] sm:$0xff]
      %v569 = vld [vmem:[#allocation2 + $0x172] sm:$0xff]
      %v570 = vlaneseq
      %v571 = vshrl.u32 %v570, 7
      %v572 = vsub.s32 2, %v571
      %v573 = vrot.slane %v336, %v572
      %v574 = vmul.f32 %v538, %v573
      %v575 = vmul.f32 %v539, %v573
      %v576 = vmul.f32 %v540, %v573
      %v577 = vmul.f32 %v541, %v573
      %v578 = vmul.f32 %v542, %v573
      %v579 = vmul.f32 %v543, %v573
      %v580 = vmul.f32 %v544, %v573
      %v581 = vmul.f32 %v545, %v573
      %v582 = vmul.f32 %v546, %v573
      %v583 = vmul.f32 %v547, %v573
      %v584 = vmul.f32 %v548, %v573
      %v585 = vmul.f32 %v549, %v573
      %v586 = vmul.f32 %v550, %v573
      %v587 = vmul.f32 %v551, %v573
      %v588 = vmul.f32 %v552, %v573
      %v589 = vmul.f32 %v553, %v573
      %v590 = vmul.f32 %v554, %v573
      %v591 = vmul.f32 %v555, %v573
      %v592 = vmul.f32 %v556, %v573
      %v593 = vmul.f32 %v557, %v573
      %v594 = vmul.f32 %v558, %v573
      %v595 = vmul.f32 %v559, %v573
      %v596 = vmul.f32 %v560, %v573
      %v597 = vmul.f32 %v561, %v573
      %v598 = vmul.f32 %v562, %v573
      %v599 = vmul.f32 %v563, %v573
      %v600 = vmul.f32 %v564, %v573
      %v601 = vmul.f32 %v565, %v573
      %v602 = vmul.f32 %v566, %v573
      %v603 = vmul.f32 %v567, %v573
      %v604 = vmul.f32 %v568, %v573
      %v605 = vmul.f32 %v569, %v573
      %v606 = vadd.f32 %v506, %v574
      %v607 = vadd.f32 %v507, %v575
      %v608 = vadd.f32 %v508, %v576
      %v609 = vadd.f32 %v509, %v577
      %v610 = vadd.f32 %v510, %v578
      %v611 = vadd.f32 %v511, %v579
      %v612 = vadd.f32 %v512, %v580
      %v613 = vadd.f32 %v513, %v581
      %v614 = vadd.f32 %v514, %v582
      %v615 = vadd.f32 %v515, %v583
      %v616 = vadd.f32 %v516, %v584
      %v617 = vadd.f32 %v517, %v585
      %v618 = vadd.f32 %v518, %v586
      %v619 = vadd.f32 %v519, %v587
      %v620 = vadd.f32 %v520, %v588
      %v621 = vadd.f32 %v521, %v589
      %v622 = vadd.f32 %v522, %v590
      %v623 = vadd.f32 %v523, %v591
      %v624 = vadd.f32 %v524, %v592
      %v625 = vadd.f32 %v525, %v593
      %v626 = vadd.f32 %v526, %v594
      %v627 = vadd.f32 %v527, %v595
      %v628 = vadd.f32 %v528, %v596
      %v629 = vadd.f32 %v529, %v597
      %v630 = vadd.f32 %v530, %v598
      %v631 = vadd.f32 %v531, %v599
      %v632 = vadd.f32 %v532, %v600
      %v633 = vadd.f32 %v533, %v601
      %v634 = vadd.f32 %v534, %v602
      %v635 = vadd.f32 %v535, %v603
      %v636 = vadd.f32 %v536, %v604
      %v637 = vadd.f32 %v537, %v605
      %v638 = vld [vmem:[%s303] sm:$0xff]
      %v639 = vld [vmem:[%s303 + $0x8] sm:$0xff]
      %v640 = vld [vmem:[%s303 + $0x18] sm:$0xff]
      %v641 = vld [vmem:[%s303 + $0x20] sm:$0xff]
      %v642 = vld [vmem:[%s303 + $0x30] sm:$0xff]
      %v643 = vld [vmem:[%s303 + $0x38] sm:$0xff]
      %v644 = vld [vmem:[%s303 + $0x48] sm:$0xff]
      %v645 = vld [vmem:[%s303 + $0x50] sm:$0xff]
      %v646 = vld [vmem:[%s303 + $0x60] sm:$0xff]
      %v647 = vld [vmem:[%s303 + $0x68] sm:$0xff]
      %v648 = vld [vmem:[%s303 + $0x78] sm:$0xff]
      %v649 = vld [vmem:[%s303 + $0x80] sm:$0xff]
      %v650 = vld [vmem:[%s303 + $0x90] sm:$0xff]
      %v651 = vld [vmem:[%s303 + $0x98] sm:$0xff]
      %v652 = vld [vmem:[%s303 + $0xa8] sm:$0xff]
      %v653 = vld [vmem:[%s303 + $0xb0] sm:$0xff]
      %v654 = vld [vmem:[%s303 + $0xc0] sm:$0xff]
      %v655 = vld [vmem:[%s303 + $0xc8] sm:$0xff]
      %v656 = vld [vmem:[%s303 + $0xd8] sm:$0xff]
      %v657 = vld [vmem:[%s303 + $0xe0] sm:$0xff]
      %v658 = vld [vmem:[%s303 + $0xf0] sm:$0xff]
      %v659 = vld [vmem:[%s303 + $0xf8] sm:$0xff]
      %v660 = vld [vmem:[%s303 + $0x108] sm:$0xff]
      %v661 = vld [vmem:[%s303 + $0x110] sm:$0xff]
      %v662 = vld [vmem:[%s303 + $0x120] sm:$0xff]
      %v663 = vld [vmem:[%s303 + $0x128] sm:$0xff]
      %v664 = vld [vmem:[%s303 + $0x138] sm:$0xff]
      %v665 = vld [vmem:[%s303 + $0x140] sm:$0xff]
      %v666 = vld [vmem:[%s303 + $0x150] sm:$0xff]
      %v667 = vld [vmem:[%s303 + $0x158] sm:$0xff]
      %v668 = vld [vmem:[%s303 + $0x168] sm:$0xff]
      %v669 = vld [vmem:[%s303 + $0x170] sm:$0xff]
      %v670 = vlaneseq
      %v671 = vshrl.u32 %v670, 7
      %v672 = vsub.s32 3, %v671
      %v673 = vrot.slane %v336, %v672
      %v674 = vmul.f32 %v638, %v673
      %v675 = vmul.f32 %v639, %v673
      %v676 = vmul.f32 %v640, %v673
      %v677 = vmul.f32 %v641, %v673
      %v678 = vmul.f32 %v642, %v673
      %v679 = vmul.f32 %v643, %v673
      %v680 = vmul.f32 %v644, %v673
      %v681 = vmul.f32 %v645, %v673
      %v682 = vmul.f32 %v646, %v673
      %v683 = vmul.f32 %v647, %v673
      %v684 = vmul.f32 %v648, %v673
      %v685 = vmul.f32 %v649, %v673
      %v686 = vmul.f32 %v650, %v673
      %v687 = vmul.f32 %v651, %v673
      %v688 = vmul.f32 %v652, %v673
      %v689 = vmul.f32 %v653, %v673
      %v690 = vmul.f32 %v654, %v673
      %v691 = vmul.f32 %v655, %v673
      %v692 = vmul.f32 %v656, %v673
      %v693 = vmul.f32 %v657, %v673
      %v694 = vmul.f32 %v658, %v673
      %v695 = vmul.f32 %v659, %v673
      %v696 = vmul.f32 %v660, %v673
      %v697 = vmul.f32 %v661, %v673
      %v698 = vmul.f32 %v662, %v673
      %v699 = vmul.f32 %v663, %v673
      %v700 = vmul.f32 %v664, %v673
      %v701 = vmul.f32 %v665, %v673
      %v702 = vmul.f32 %v666, %v673
      %v703 = vmul.f32 %v667, %v673
      %v704 = vmul.f32 %v668, %v673
      %v705 = vmul.f32 %v669, %v673
      %v706 = vadd.f32 %v606, %v674
      %v707 = vadd.f32 %v607, %v675
      %v708 = vadd.f32 %v608, %v676
      %v709 = vadd.f32 %v609, %v677
      %v710 = vadd.f32 %v610, %v678
      %v711 = vadd.f32 %v611, %v679
      %v712 = vadd.f32 %v612, %v680
      %v713 = vadd.f32 %v613, %v681
      %v714 = vadd.f32 %v614, %v682
      %v715 = vadd.f32 %v615, %v683
      %v716 = vadd.f32 %v616, %v684
      %v717 = vadd.f32 %v617, %v685
      %v718 = vadd.f32 %v618, %v686
      %v719 = vadd.f32 %v619, %v687
      %v720 = vadd.f32 %v620, %v688
      %v721 = vadd.f32 %v621, %v689
      %v722 = vadd.f32 %v622, %v690
      %v723 = vadd.f32 %v623, %v691
      %v724 = vadd.f32 %v624, %v692
      %v725 = vadd.f32 %v625, %v693
      %v726 = vadd.f32 %v626, %v694
      %v727 = vadd.f32 %v627, %v695
      %v728 = vadd.f32 %v628, %v696
      %v729 = vadd.f32 %v629, %v697
      %v730 = vadd.f32 %v630, %v698
      %v731 = vadd.f32 %v631, %v699
      %v732 = vadd.f32 %v632, %v700
      %v733 = vadd.f32 %v633, %v701
      %v734 = vadd.f32 %v634, %v702
      %v735 = vadd.f32 %v635, %v703
      %v736 = vadd.f32 %v636, %v704
      %v737 = vadd.f32 %v637, %v705
      %v738 = vld [vmem:[%s303 + $0x1] sm:$0xff]
      %v739 = vld [vmem:[%s303 + $0x9] sm:$0xff]
      %v740 = vld [vmem:[%s303 + $0x19] sm:$0xff]
      %v741 = vld [vmem:[%s303 + $0x21] sm:$0xff]
      %v742 = vld [vmem:[%s303 + $0x31] sm:$0xff]
      %v743 = vld [vmem:[%s303 + $0x39] sm:$0xff]
      %v744 = vld [vmem:[%s303 + $0x49] sm:$0xff]
      %v745 = vld [vmem:[%s303 + $0x51] sm:$0xff]
      %v746 = vld [vmem:[%s303 + $0x61] sm:$0xff]
      %v747 = vld [vmem:[%s303 + $0x69] sm:$0xff]
      %v748 = vld [vmem:[%s303 + $0x79] sm:$0xff]
      %v749 = vld [vmem:[%s303 + $0x81] sm:$0xff]
      %v750 = vld [vmem:[%s303 + $0x91] sm:$0xff]
      %v751 = vld [vmem:[%s303 + $0x99] sm:$0xff]
      %v752 = vld [vmem:[%s303 + $0xa9] sm:$0xff]
      %v753 = vld [vmem:[%s303 + $0xb1] sm:$0xff]
      %v754 = vld [vmem:[%s303 + $0xc1] sm:$0xff]
      %v755 = vld [vmem:[%s303 + $0xc9] sm:$0xff]
      %v756 = vld [vmem:[%s303 + $0xd9] sm:$0xff]
      %v757 = vld [vmem:[%s303 + $0xe1] sm:$0xff]
      %v758 = vld [vmem:[%s303 + $0xf1] sm:$0xff]
      %v759 = vld [vmem:[%s303 + $0xf9] sm:$0xff]
      %v760 = vld [vmem:[%s303 + $0x109] sm:$0xff]
      %v761 = vld [vmem:[%s303 + $0x111] sm:$0xff]
      %v762 = vld [vmem:[%s303 + $0x121] sm:$0xff]
      %v763 = vld [vmem:[%s303 + $0x129] sm:$0xff]
      %v764 = vld [vmem:[%s303 + $0x139] sm:$0xff]
      %v765 = vld [vmem:[%s303 + $0x141] sm:$0xff]
      %v766 = vld [vmem:[%s303 + $0x151] sm:$0xff]
      %v767 = vld [vmem:[%s303 + $0x159] sm:$0xff]
      %v768 = vld [vmem:[%s303 + $0x169] sm:$0xff]
      %v769 = vld [vmem:[%s303 + $0x171] sm:$0xff]
      %v770 = vlaneseq
      %v771 = vshrl.u32 %v770, 7
      %v772 = vsub.s32 4, %v771
      %v773 = vrot.slane %v336, %v772
      %v774 = vmul.f32 %v738, %v773
      %v775 = vmul.f32 %v739, %v773
      %v776 = vmul.f32 %v740, %v773
      %v777 = vmul.f32 %v741, %v773
      %v778 = vmul.f32 %v742, %v773
      %v779 = vmul.f32 %v743, %v773
      %v780 = vmul.f32 %v744, %v773
      %v781 = vmul.f32 %v745, %v773
      %v782 = vmul.f32 %v746, %v773
      %v783 = vmul.f32 %v747, %v773
      %v784 = vmul.f32 %v748, %v773
      %v785 = vmul.f32 %v749, %v773
      %v786 = vmul.f32 %v750, %v773
      %v787 = vmul.f32 %v751, %v773
      %v788 = vmul.f32 %v752, %v773
      %v789 = vmul.f32 %v753, %v773
      %v790 = vmul.f32 %v754, %v773
      %v791 = vmul.f32 %v755, %v773
      %v792 = vmul.f32 %v756, %v773
      %v793 = vmul.f32 %v757, %v773
      %v794 = vmul.f32 %v758, %v773
      %v795 = vmul.f32 %v759, %v773
      %v796 = vmul.f32 %v760, %v773
      %v797 = vmul.f32 %v761, %v773
      %v798 = vmul.f32 %v762, %v773
      %v799 = vmul.f32 %v763, %v773
      %v800 = vmul.f32 %v764, %v773
      %v801 = vmul.f32 %v765, %v773
      %v802 = vmul.f32 %v766, %v773
      %v803 = vmul.f32 %v767, %v773
      %v804 = vmul.f32 %v768, %v773
      %v805 = vmul.f32 %v769, %v773
      %v806 = vadd.f32 %v706, %v774
      %v807 = vadd.f32 %v707, %v775
      %v808 = vadd.f32 %v708, %v776
      %v809 = vadd.f32 %v709, %v777
      %v810 = vadd.f32 %v710, %v778
      %v811 = vadd.f32 %v711, %v779
      %v812 = vadd.f32 %v712, %v780
      %v813 = vadd.f32 %v713, %v781
      %v814 = vadd.f32 %v714, %v782
      %v815 = vadd.f32 %v715, %v783
      %v816 = vadd.f32 %v716, %v784
      %v817 = vadd.f32 %v717, %v785
      %v818 = vadd.f32 %v718, %v786
      %v819 = vadd.f32 %v719, %v787
      %v820 = vadd.f32 %v720, %v788
      %v821 = vadd.f32 %v721, %v789
      %v822 = vadd.f32 %v722, %v790
      %v823 = vadd.f32 %v723, %v791
      %v824 = vadd.f32 %v724, %v792
      %v825 = vadd.f32 %v725, %v793
      %v826 = vadd.f32 %v726, %v794
      %v827 = vadd.f32 %v727, %v795
      %v828 = vadd.f32 %v728, %v796
      %v829 = vadd.f32 %v729, %v797
      %v830 = vadd.f32 %v730, %v798
      %v831 = vadd.f32 %v731, %v799
      %v832 = vadd.f32 %v732, %v800
      %v833 = vadd.f32 %v733, %v801
      %v834 = vadd.f32 %v734, %v802
      %v835 = vadd.f32 %v735, %v803
      %v836 = vadd.f32 %v736, %v804
      %v837 = vadd.f32 %v737, %v805
      %v838 = vld [vmem:[%s303 + $0x2] sm:$0xff]
      %v839 = vld [vmem:[%s303 + $0xa] sm:$0xff]
      %v840 = vld [vmem:[%s303 + $0x1a] sm:$0xff]
      %v841 = vld [vmem:[%s303 + $0x22] sm:$0xff]
      %v842 = vld [vmem:[%s303 + $0x32] sm:$0xff]
      %v843 = vld [vmem:[%s303 + $0x3a] sm:$0xff]
      %v844 = vld [vmem:[%s303 + $0x4a] sm:$0xff]
      %v845 = vld [vmem:[%s303 + $0x52] sm:$0xff]
      %v846 = vld [vmem:[%s303 + $0x62] sm:$0xff]
      %v847 = vld [vmem:[%s303 + $0x6a] sm:$0xff]
      %v848 = vld [vmem:[%s303 + $0x7a] sm:$0xff]
      %v849 = vld [vmem:[%s303 + $0x82] sm:$0xff]
      %v850 = vld [vmem:[%s303 + $0x92] sm:$0xff]
      %v851 = vld [vmem:[%s303 + $0x9a] sm:$0xff]
      %v852 = vld [vmem:[%s303 + $0xaa] sm:$0xff]
      %v853 = vld [vmem:[%s303 + $0xb2] sm:$0xff]
      %v854 = vld [vmem:[%s303 + $0xc2] sm:$0xff]
      %v855 = vld [vmem:[%s303 + $0xca] sm:$0xff]
      %v856 = vld [vmem:[%s303 + $0xda] sm:$0xff]
      %v857 = vld [vmem:[%s303 + $0xe2] sm:$0xff]
      %v858 = vld [vmem:[%s303 + $0xf2] sm:$0xff]
      %v859 = vld [vmem:[%s303 + $0xfa] sm:$0xff]
      %v860 = vld [vmem:[%s303 + $0x10a] sm:$0xff]
      %v861 = vld [vmem:[%s303 + $0x112] sm:$0xff]
      %v862 = vld [vmem:[%s303 + $0x122] sm:$0xff]
      %v863 = vld [vmem:[%s303 + $0x12a] sm:$0xff]
      %v864 = vld [vmem:[%s303 + $0x13a] sm:$0xff]
      %v865 = vld [vmem:[%s303 + $0x142] sm:$0xff]
      %v866 = vld [vmem:[%s303 + $0x152] sm:$0xff]
      %v867 = vld [vmem:[%s303 + $0x15a] sm:$0xff]
      %v868 = vld [vmem:[%s303 + $0x16a] sm:$0xff]
      %v869 = vld [vmem:[%s303 + $0x172] sm:$0xff]
      %v870 = vlaneseq
      %v871 = vshrl.u32 %v870, 7
      %v872 = vsub.s32 5, %v871
      %v873 = vrot.slane %v336, %v872
      %v874 = vmul.f32 %v838, %v873
      %v875 = vmul.f32 %v839, %v873
      %v876 = vmul.f32 %v840, %v873
      %v877 = vmul.f32 %v841, %v873
      %v878 = vmul.f32 %v842, %v873
      %v879 = vmul.f32 %v843, %v873
      %v880 = vmul.f32 %v844, %v873
      %v881 = vmul.f32 %v845, %v873
      %v882 = vmul.f32 %v846, %v873
      %v883 = vmul.f32 %v847, %v873
      %v884 = vmul.f32 %v848, %v873
      %v885 = vmul.f32 %v849, %v873
      %v886 = vmul.f32 %v850, %v873
      %v887 = vmul.f32 %v851, %v873
      %v888 = vmul.f32 %v852, %v873
      %v889 = vmul.f32 %v853, %v873
      %v890 = vmul.f32 %v854, %v873
      %v891 = vmul.f32 %v855, %v873
      %v892 = vmul.f32 %v856, %v873
      %v893 = vmul.f32 %v857, %v873
      %v894 = vmul.f32 %v858, %v873
      %v895 = vmul.f32 %v859, %v873
      %v896 = vmul.f32 %v860, %v873
      %v897 = vmul.f32 %v861, %v873
      %v898 = vmul.f32 %v862, %v873
      %v899 = vmul.f32 %v863, %v873
      %v900 = vmul.f32 %v864, %v873
      %v901 = vmul.f32 %v865, %v873
      %v902 = vmul.f32 %v866, %v873
      %v903 = vmul.f32 %v867, %v873
      %v904 = vmul.f32 %v868, %v873
      %v905 = vmul.f32 %v869, %v873
      %v906 = vadd.f32 %v806, %v874
      %v907 = vadd.f32 %v807, %v875
      %v908 = vadd.f32 %v808, %v876
      %v909 = vadd.f32 %v809, %v877
      %v910 = vadd.f32 %v810, %v878
      %v911 = vadd.f32 %v811, %v879
      %v912 = vadd.f32 %v812, %v880
      %v913 = vadd.f32 %v813, %v881
      %v914 = vadd.f32 %v814, %v882
      %v915 = vadd.f32 %v815, %v883
      %v916 = vadd.f32 %v816, %v884
      %v917 = vadd.f32 %v817, %v885
      %v918 = vadd.f32 %v818, %v886
      %v919 = vadd.f32 %v819, %v887
      %v920 = vadd.f32 %v820, %v888
      %v921 = vadd.f32 %v821, %v889
      %v922 = vadd.f32 %v822, %v890
      %v923 = vadd.f32 %v823, %v891
      %v924 = vadd.f32 %v824, %v892
      %v925 = vadd.f32 %v825, %v893
      %v926 = vadd.f32 %v826, %v894
      %v927 = vadd.f32 %v827, %v895
      %v928 = vadd.f32 %v828, %v896
      %v929 = vadd.f32 %v829, %v897
      %v930 = vadd.f32 %v830, %v898
      %v931 = vadd.f32 %v831, %v899
      %v932 = vadd.f32 %v832, %v900
      %v933 = vadd.f32 %v833, %v901
      %v934 = vadd.f32 %v834, %v902
      %v935 = vadd.f32 %v835, %v903
      %v936 = vadd.f32 %v836, %v904
      %v937 = vadd.f32 %v837, %v905
      %s938 = scalar_lea.vmem [#allocation2], 48
      %v939 = vld [vmem:[%s938] sm:$0xff]
      %v940 = vld [vmem:[%s938 + $0x8] sm:$0xff]
      %v941 = vld [vmem:[%s938 + $0x18] sm:$0xff]
      %v942 = vld [vmem:[%s938 + $0x20] sm:$0xff]
      %v943 = vld [vmem:[%s938 + $0x30] sm:$0xff]
      %v944 = vld [vmem:[%s938 + $0x38] sm:$0xff]
      %v945 = vld [vmem:[%s938 + $0x48] sm:$0xff]
      %v946 = vld [vmem:[%s938 + $0x50] sm:$0xff]
      %v947 = vld [vmem:[%s938 + $0x60] sm:$0xff]
      %v948 = vld [vmem:[%s938 + $0x68] sm:$0xff]
      %v949 = vld [vmem:[%s938 + $0x78] sm:$0xff]
      %v950 = vld [vmem:[%s938 + $0x80] sm:$0xff]
      %v951 = vld [vmem:[%s938 + $0x90] sm:$0xff]
      %v952 = vld [vmem:[%s938 + $0x98] sm:$0xff]
      %v953 = vld [vmem:[%s938 + $0xa8] sm:$0xff]
      %v954 = vld [vmem:[%s938 + $0xb0] sm:$0xff]
      %v955 = vld [vmem:[%s938 + $0xc0] sm:$0xff]
      %v956 = vld [vmem:[%s938 + $0xc8] sm:$0xff]
      %v957 = vld [vmem:[%s938 + $0xd8] sm:$0xff]
      %v958 = vld [vmem:[%s938 + $0xe0] sm:$0xff]
      %v959 = vld [vmem:[%s938 + $0xf0] sm:$0xff]
      %v960 = vld [vmem:[%s938 + $0xf8] sm:$0xff]
      %v961 = vld [vmem:[%s938 + $0x108] sm:$0xff]
      %v962 = vld [vmem:[%s938 + $0x110] sm:$0xff]
      %v963 = vld [vmem:[%s938 + $0x120] sm:$0xff]
      %v964 = vld [vmem:[%s938 + $0x128] sm:$0xff]
      %v965 = vld [vmem:[%s938 + $0x138] sm:$0xff]
      %v966 = vld [vmem:[%s938 + $0x140] sm:$0xff]
      %v967 = vld [vmem:[%s938 + $0x150] sm:$0xff]
      %v968 = vld [vmem:[%s938 + $0x158] sm:$0xff]
      %v969 = vld [vmem:[%s938 + $0x168] sm:$0xff]
      %v970 = vld [vmem:[%s938 + $0x170] sm:$0xff]
      %v971 = vlaneseq
      %v972 = vshrl.u32 %v971, 7
      %v973 = vsub.s32 6, %v972
      %v974 = vrot.slane %v336, %v973
      %v975 = vmul.f32 %v939, %v974
      %v976 = vmul.f32 %v940, %v974
      %v977 = vmul.f32 %v941, %v974
      %v978 = vmul.f32 %v942, %v974
      %v979 = vmul.f32 %v943, %v974
      %v980 = vmul.f32 %v944, %v974
      %v981 = vmul.f32 %v945, %v974
      %v982 = vmul.f32 %v946, %v974
      %v983 = vmul.f32 %v947, %v974
      %v984 = vmul.f32 %v948, %v974
      %v985 = vmul.f32 %v949, %v974
      %v986 = vmul.f32 %v950, %v974
      %v987 = vmul.f32 %v951, %v974
      %v988 = vmul.f32 %v952, %v974
      %v989 = vmul.f32 %v953, %v974
      %v990 = vmul.f32 %v954, %v974
      %v991 = vmul.f32 %v955, %v974
      %v992 = vmul.f32 %v956, %v974
      %v993 = vmul.f32 %v957, %v974
      %v994 = vmul.f32 %v958, %v974
      %v995 = vmul.f32 %v959, %v974
      %v996 = vmul.f32 %v960, %v974
      %v997 = vmul.f32 %v961, %v974
      %v998 = vmul.f32 %v962, %v974
      %v999 = vmul.f32 %v963, %v974
      %v1000 = vmul.f32 %v964, %v974
      %v1001 = vmul.f32 %v965, %v974
      %v1002 = vmul.f32 %v966, %v974
      %v1003 = vmul.f32 %v967, %v974
      %v1004 = vmul.f32 %v968, %v974
      %v1005 = vmul.f32 %v969, %v974
      %v1006 = vmul.f32 %v970, %v974
      %v1007 = vadd.f32 %v906, %v975
      %v1008 = vadd.f32 %v907, %v976
      %v1009 = vadd.f32 %v908, %v977
      %v1010 = vadd.f32 %v909, %v978
      %v1011 = vadd.f32 %v910, %v979
      %v1012 = vadd.f32 %v911, %v980
      %v1013 = vadd.f32 %v912, %v981
      %v1014 = vadd.f32 %v913, %v982
      %v1015 = vadd.f32 %v914, %v983
      %v1016 = vadd.f32 %v915, %v984
      %v1017 = vadd.f32 %v916, %v985
      %v1018 = vadd.f32 %v917, %v986
      %v1019 = vadd.f32 %v918, %v987
      %v1020 = vadd.f32 %v919, %v988
      %v1021 = vadd.f32 %v920, %v989
      %v1022 = vadd.f32 %v921, %v990
      %v1023 = vadd.f32 %v922, %v991
      %v1024 = vadd.f32 %v923, %v992
      %v1025 = vadd.f32 %v924, %v993
      %v1026 = vadd.f32 %v925, %v994
      %v1027 = vadd.f32 %v926, %v995
      %v1028 = vadd.f32 %v927, %v996
      %v1029 = vadd.f32 %v928, %v997
      %v1030 = vadd.f32 %v929, %v998
      %v1031 = vadd.f32 %v930, %v999
      %v1032 = vadd.f32 %v931, %v1000
      %v1033 = vadd.f32 %v932, %v1001
      %v1034 = vadd.f32 %v933, %v1002
      %v1035 = vadd.f32 %v934, %v1003
      %v1036 = vadd.f32 %v935, %v1004
      %v1037 = vadd.f32 %v936, %v1005
      %v1038 = vadd.f32 %v937, %v1006
      %v1039 = vld [vmem:[%s938 + $0x1] sm:$0xff]
      %v1040 = vld [vmem:[%s938 + $0x9] sm:$0xff]
      %v1041 = vld [vmem:[%s938 + $0x19] sm:$0xff]
      %v1042 = vld [vmem:[%s938 + $0x21] sm:$0xff]
      %v1043 = vld [vmem:[%s938 + $0x31] sm:$0xff]
      %v1044 = vld [vmem:[%s938 + $0x39] sm:$0xff]
      %v1045 = vld [vmem:[%s938 + $0x49] sm:$0xff]
      %v1046 = vld [vmem:[%s938 + $0x51] sm:$0xff]
      %v1047 = vld [vmem:[%s938 + $0x61] sm:$0xff]
      %v1048 = vld [vmem:[%s938 + $0x69] sm:$0xff]
      %v1049 = vld [vmem:[%s938 + $0x79] sm:$0xff]
      %v1050 = vld [vmem:[%s938 + $0x81] sm:$0xff]
      %v1051 = vld [vmem:[%s938 + $0x91] sm:$0xff]
      %v1052 = vld [vmem:[%s938 + $0x99] sm:$0xff]
      %v1053 = vld [vmem:[%s938 + $0xa9] sm:$0xff]
      %v1054 = vld [vmem:[%s938 + $0xb1] sm:$0xff]
      %v1055 = vld [vmem:[%s938 + $0xc1] sm:$0xff]
      %v1056 = vld [vmem:[%s938 + $0xc9] sm:$0xff]
      %v1057 = vld [vmem:[%s938 + $0xd9] sm:$0xff]
      %v1058 = vld [vmem:[%s938 + $0xe1] sm:$0xff]
      %v1059 = vld [vmem:[%s938 + $0xf1] sm:$0xff]
      %v1060 = vld [vmem:[%s938 + $0xf9] sm:$0xff]
      %v1061 = vld [vmem:[%s938 + $0x109] sm:$0xff]
      %v1062 = vld [vmem:[%s938 + $0x111] sm:$0xff]
      %v1063 = vld [vmem:[%s938 + $0x121] sm:$0xff]
      %v1064 = vld [vmem:[%s938 + $0x129] sm:$0xff]
      %v1065 = vld [vmem:[%s938 + $0x139] sm:$0xff]
      %v1066 = vld [vmem:[%s938 + $0x141] sm:$0xff]
      %v1067 = vld [vmem:[%s938 + $0x151] sm:$0xff]
      %v1068 = vld [vmem:[%s938 + $0x159] sm:$0xff]
      %v1069 = vld [vmem:[%s938 + $0x169] sm:$0xff]
      %v1070 = vld [vmem:[%s938 + $0x171] sm:$0xff]
      %v1071 = vlaneseq
      %v1072 = vshrl.u32 %v1071, 7
      %v1073 = vsub.s32 7, %v1072
      %v1074 = vrot.slane %v336, %v1073
      %v1075 = vmul.f32 %v1039, %v1074
      %v1076 = vmul.f32 %v1040, %v1074
      %v1077 = vmul.f32 %v1041, %v1074
      %v1078 = vmul.f32 %v1042, %v1074
      %v1079 = vmul.f32 %v1043, %v1074
      %v1080 = vmul.f32 %v1044, %v1074
      %v1081 = vmul.f32 %v1045, %v1074
      %v1082 = vmul.f32 %v1046, %v1074
      %v1083 = vmul.f32 %v1047, %v1074
      %v1084 = vmul.f32 %v1048, %v1074
      %v1085 = vmul.f32 %v1049, %v1074
      %v1086 = vmul.f32 %v1050, %v1074
      %v1087 = vmul.f32 %v1051, %v1074
      %v1088 = vmul.f32 %v1052, %v1074
      %v1089 = vmul.f32 %v1053, %v1074
      %v1090 = vmul.f32 %v1054, %v1074
      %v1091 = vmul.f32 %v1055, %v1074
      %v1092 = vmul.f32 %v1056, %v1074
      %v1093 = vmul.f32 %v1057, %v1074
      %v1094 = vmul.f32 %v1058, %v1074
      %v1095 = vmul.f32 %v1059, %v1074
      %v1096 = vmul.f32 %v1060, %v1074
      %v1097 = vmul.f32 %v1061, %v1074
      %v1098 = vmul.f32 %v1062, %v1074
      %v1099 = vmul.f32 %v1063, %v1074
      %v1100 = vmul.f32 %v1064, %v1074
      %v1101 = vmul.f32 %v1065, %v1074
      %v1102 = vmul.f32 %v1066, %v1074
      %v1103 = vmul.f32 %v1067, %v1074
      %v1104 = vmul.f32 %v1068, %v1074
      %v1105 = vmul.f32 %v1069, %v1074
      %v1106 = vmul.f32 %v1070, %v1074
      %v1107 = vadd.f32 %v1007, %v1075
      %v1108 = vadd.f32 %v1008, %v1076
      %v1109 = vadd.f32 %v1009, %v1077
      %v1110 = vadd.f32 %v1010, %v1078
      %v1111 = vadd.f32 %v1011, %v1079
      %v1112 = vadd.f32 %v1012, %v1080
      %v1113 = vadd.f32 %v1013, %v1081
      %v1114 = vadd.f32 %v1014, %v1082
      %v1115 = vadd.f32 %v1015, %v1083
      %v1116 = vadd.f32 %v1016, %v1084
      %v1117 = vadd.f32 %v1017, %v1085
      %v1118 = vadd.f32 %v1018, %v1086
      %v1119 = vadd.f32 %v1019, %v1087
      %v1120 = vadd.f32 %v1020, %v1088
      %v1121 = vadd.f32 %v1021, %v1089
      %v1122 = vadd.f32 %v1022, %v1090
      %v1123 = vadd.f32 %v1023, %v1091
      %v1124 = vadd.f32 %v1024, %v1092
      %v1125 = vadd.f32 %v1025, %v1093
      %v1126 = vadd.f32 %v1026, %v1094
      %v1127 = vadd.f32 %v1027, %v1095
      %v1128 = vadd.f32 %v1028, %v1096
      %v1129 = vadd.f32 %v1029, %v1097
      %v1130 = vadd.f32 %v1030, %v1098
      %v1131 = vadd.f32 %v1031, %v1099
      %v1132 = vadd.f32 %v1032, %v1100
      %v1133 = vadd.f32 %v1033, %v1101
      %v1134 = vadd.f32 %v1034, %v1102
      %v1135 = vadd.f32 %v1035, %v1103
      %v1136 = vadd.f32 %v1036, %v1104
      %v1137 = vadd.f32 %v1037, %v1105
      %v1138 = vadd.f32 %v1038, %v1106
      %v1139 = vld [vmem:[%s938 + $0x2] sm:$0xff]
      %v1140 = vld [vmem:[%s938 + $0xa] sm:$0xff]
      %v1141 = vld [vmem:[%s938 + $0x1a] sm:$0xff]
      %v1142 = vld [vmem:[%s938 + $0x22] sm:$0xff]
      %v1143 = vld [vmem:[%s938 + $0x32] sm:$0xff]
      %v1144 = vld [vmem:[%s938 + $0x3a] sm:$0xff]
      %v1145 = vld [vmem:[%s938 + $0x4a] sm:$0xff]
      %v1146 = vld [vmem:[%s938 + $0x52] sm:$0xff]
      %v1147 = vld [vmem:[%s938 + $0x62] sm:$0xff]
      %v1148 = vld [vmem:[%s938 + $0x6a] sm:$0xff]
      %v1149 = vld [vmem:[%s938 + $0x7a] sm:$0xff]
      %v1150 = vld [vmem:[%s938 + $0x82] sm:$0xff]
      %v1151 = vld [vmem:[%s938 + $0x92] sm:$0xff]
      %v1152 = vld [vmem:[%s938 + $0x9a] sm:$0xff]
      %v1153 = vld [vmem:[%s938 + $0xaa] sm:$0xff]
      %v1154 = vld [vmem:[%s938 + $0xb2] sm:$0xff]
      %v1155 = vld [vmem:[%s938 + $0xc2] sm:$0xff]
      %v1156 = vld [vmem:[%s938 + $0xca] sm:$0xff]
      %v1157 = vld [vmem:[%s938 + $0xda] sm:$0xff]
      %v1158 = vld [vmem:[%s938 + $0xe2] sm:$0xff]
      %v1159 = vld [vmem:[%s938 + $0xf2] sm:$0xff]
      %v1160 = vld [vmem:[%s938 + $0xfa] sm:$0xff]
      %v1161 = vld [vmem:[%s938 + $0x10a] sm:$0xff]
      %v1162 = vld [vmem:[%s938 + $0x112] sm:$0xff]
      %v1163 = vld [vmem:[%s938 + $0x122] sm:$0xff]
      %v1164 = vld [vmem:[%s938 + $0x12a] sm:$0xff]
      %v1165 = vld [vmem:[%s938 + $0x13a] sm:$0xff]
      %v1166 = vld [vmem:[%s938 + $0x142] sm:$0xff]
      %v1167 = vld [vmem:[%s938 + $0x152] sm:$0xff]
      %v1168 = vld [vmem:[%s938 + $0x15a] sm:$0xff]
      %v1169 = vld [vmem:[%s938 + $0x16a] sm:$0xff]
      %v1170 = vld [vmem:[%s938 + $0x172] sm:$0xff]
      %v1171 = vlaneseq
      %v1172 = vshrl.u32 %v1171, 7
      %v1173 = vsub.s32 0, %v1172
      %v1174 = vrot.slane %v337, %v1173
      %v1175 = vmul.f32 %v1139, %v1174
      %v1176 = vmul.f32 %v1140, %v1174
      %v1177 = vmul.f32 %v1141, %v1174
      %v1178 = vmul.f32 %v1142, %v1174
      %v1179 = vmul.f32 %v1143, %v1174
      %v1180 = vmul.f32 %v1144, %v1174
      %v1181 = vmul.f32 %v1145, %v1174
      %v1182 = vmul.f32 %v1146, %v1174
      %v1183 = vmul.f32 %v1147, %v1174
      %v1184 = vmul.f32 %v1148, %v1174
      %v1185 = vmul.f32 %v1149, %v1174
      %v1186 = vmul.f32 %v1150, %v1174
      %v1187 = vmul.f32 %v1151, %v1174
      %v1188 = vmul.f32 %v1152, %v1174
      %v1189 = vmul.f32 %v1153, %v1174
      %v1190 = vmul.f32 %v1154, %v1174
      %v1191 = vmul.f32 %v1155, %v1174
      %v1192 = vmul.f32 %v1156, %v1174
      %v1193 = vmul.f32 %v1157, %v1174
      %v1194 = vmul.f32 %v1158, %v1174
      %v1195 = vmul.f32 %v1159, %v1174
      %v1196 = vmul.f32 %v1160, %v1174
      %v1197 = vmul.f32 %v1161, %v1174
      %v1198 = vmul.f32 %v1162, %v1174
      %v1199 = vmul.f32 %v1163, %v1174
      %v1200 = vmul.f32 %v1164, %v1174
      %v1201 = vmul.f32 %v1165, %v1174
      %v1202 = vmul.f32 %v1166, %v1174
      %v1203 = vmul.f32 %v1167, %v1174
      %v1204 = vmul.f32 %v1168, %v1174
      %v1205 = vmul.f32 %v1169, %v1174
      %v1206 = vmul.f32 %v1170, %v1174
      %v1207 = vadd.f32 %v1107, %v1175
      %v1208 = vadd.f32 %v1108, %v1176
      %v1209 = vadd.f32 %v1109, %v1177
      %v1210 = vadd.f32 %v1110, %v1178
      %v1211 = vadd.f32 %v1111, %v1179
      %v1212 = vadd.f32 %v1112, %v1180
      %v1213 = vadd.f32 %v1113, %v1181
      %v1214 = vadd.f32 %v1114, %v1182
      %v1215 = vadd.f32 %v1115, %v1183
      %v1216 = vadd.f32 %v1116, %v1184
      %v1217 = vadd.f32 %v1117, %v1185
      %v1218 = vadd.f32 %v1118, %v1186
      %v1219 = vadd.f32 %v1119, %v1187
      %v1220 = vadd.f32 %v1120, %v1188
      %v1221 = vadd.f32 %v1121, %v1189
      %v1222 = vadd.f32 %v1122, %v1190
      %v1223 = vadd.f32 %v1123, %v1191
      %v1224 = vadd.f32 %v1124, %v1192
      %v1225 = vadd.f32 %v1125, %v1193
      %v1226 = vadd.f32 %v1126, %v1194
      %v1227 = vadd.f32 %v1127, %v1195
      %v1228 = vadd.f32 %v1128, %v1196
      %v1229 = vadd.f32 %v1129, %v1197
      %v1230 = vadd.f32 %v1130, %v1198
      %v1231 = vadd.f32 %v1131, %v1199
      %v1232 = vadd.f32 %v1132, %v1200
      %v1233 = vadd.f32 %v1133, %v1201
      %v1234 = vadd.f32 %v1134, %v1202
      %v1235 = vadd.f32 %v1135, %v1203
      %v1236 = vadd.f32 %v1136, %v1204
      %v1237 = vadd.f32 %v1137, %v1205
      %v1238 = vadd.f32 %v1138, %v1206
      %v1239 = vld [vmem:[%s2] sm:$0x1]
      %v1240 = vlaneseq
      %v1241 = vshrl.u32 %v1240, 7
      %v1242 = vsub.s32 0, %v1241
      %v1243 = vrot.slane %v1239, %v1242
      %v1244 = vmul.f32 %v1207, %v1243
      %v1245 = vmul.f32 %v1208, %v1243
      %v1246 = vmul.f32 %v1209, %v1243
      %v1247 = vmul.f32 %v1210, %v1243
      %v1248 = vmul.f32 %v1211, %v1243
      %v1249 = vmul.f32 %v1212, %v1243
      %v1250 = vmul.f32 %v1213, %v1243
      %v1251 = vmul.f32 %v1214, %v1243
      %v1252 = vmul.f32 %v1215, %v1243
      %v1253 = vmul.f32 %v1216, %v1243
      %v1254 = vmul.f32 %v1217, %v1243
      %v1255 = vmul.f32 %v1218, %v1243
      %v1256 = vmul.f32 %v1219, %v1243
      %v1257 = vmul.f32 %v1220, %v1243
      %v1258 = vmul.f32 %v1221, %v1243
      %v1259 = vmul.f32 %v1222, %v1243
      %v1260 = vmul.f32 %v1223, %v1243
      %v1261 = vmul.f32 %v1224, %v1243
      %v1262 = vmul.f32 %v1225, %v1243
      %v1263 = vmul.f32 %v1226, %v1243
      %v1264 = vmul.f32 %v1227, %v1243
      %v1265 = vmul.f32 %v1228, %v1243
      %v1266 = vmul.f32 %v1229, %v1243
      %v1267 = vmul.f32 %v1230, %v1243
      %v1268 = vmul.f32 %v1231, %v1243
      %v1269 = vmul.f32 %v1232, %v1243
      %v1270 = vmul.f32 %v1233, %v1243
      %v1271 = vmul.f32 %v1234, %v1243
      %v1272 = vmul.f32 %v1235, %v1243
      %v1273 = vmul.f32 %v1236, %v1243
      %v1274 = vmul.f32 %v1237, %v1243
      %v1275 = vmul.f32 %v1238, %v1243
      %v1276 = vld [vmem:[%s2 + $0x1] sm:$0x1]
      %v1277 = vlaneseq
      %v1278 = vshrl.u32 %v1277, 7
      %v1279 = vsub.s32 0, %v1278
      %v1280 = vrot.slane %v1276, %v1279
      %v1281 = vadd.f32 %v1244, %v1280
      %v1282 = vadd.f32 %v1245, %v1280
      %v1283 = vadd.f32 %v1246, %v1280
      %v1284 = vadd.f32 %v1247, %v1280
      %v1285 = vadd.f32 %v1248, %v1280
      %v1286 = vadd.f32 %v1249, %v1280
      %v1287 = vadd.f32 %v1250, %v1280
      %v1288 = vadd.f32 %v1251, %v1280
      %v1289 = vadd.f32 %v1252, %v1280
      %v1290 = vadd.f32 %v1253, %v1280
      %v1291 = vadd.f32 %v1254, %v1280
      %v1292 = vadd.f32 %v1255, %v1280
      %v1293 = vadd.f32 %v1256, %v1280
      %v1294 = vadd.f32 %v1257, %v1280
      %v1295 = vadd.f32 %v1258, %v1280
      %v1296 = vadd.f32 %v1259, %v1280
      %v1297 = vadd.f32 %v1260, %v1280
      %v1298 = vadd.f32 %v1261, %v1280
      %v1299 = vadd.f32 %v1262, %v1280
      %v1300 = vadd.f32 %v1263, %v1280
      %v1301 = vadd.f32 %v1264, %v1280
      %v1302 = vadd.f32 %v1265, %v1280
      %v1303 = vadd.f32 %v1266, %v1280
      %v1304 = vadd.f32 %v1267, %v1280
      %v1305 = vadd.f32 %v1268, %v1280
      %v1306 = vadd.f32 %v1269, %v1280
      %v1307 = vadd.f32 %v1270, %v1280
      %v1308 = vadd.f32 %v1271, %v1280
      %v1309 = vadd.f32 %v1272, %v1280
      %v1310 = vadd.f32 %v1273, %v1280
      %v1311 = vadd.f32 %v1274, %v1280
      %v1312 = vadd.f32 %v1275, %v1280
      %v1313 = vxor.u32 %v1281, 2147483648
      %v1314 = vxor.u32 %v1282, 2147483648
      %v1315 = vxor.u32 %v1283, 2147483648
      %v1316 = vxor.u32 %v1284, 2147483648
      %v1317 = vxor.u32 %v1285, 2147483648
      %v1318 = vxor.u32 %v1286, 2147483648
      %v1319 = vxor.u32 %v1287, 2147483648
      %v1320 = vxor.u32 %v1288, 2147483648
      %v1321 = vxor.u32 %v1289, 2147483648
      %v1322 = vxor.u32 %v1290, 2147483648
      %v1323 = vxor.u32 %v1291, 2147483648
      %v1324 = vxor.u32 %v1292, 2147483648
      %v1325 = vxor.u32 %v1293, 2147483648
      %v1326 = vxor.u32 %v1294, 2147483648
      %v1327 = vxor.u32 %v1295, 2147483648
      %v1328 = vxor.u32 %v1296, 2147483648
      %v1329 = vxor.u32 %v1297, 2147483648
      %v1330 = vxor.u32 %v1298, 2147483648
      %v1331 = vxor.u32 %v1299, 2147483648
      %v1332 = vxor.u32 %v1300, 2147483648
      %v1333 = vxor.u32 %v1301, 2147483648
      %v1334 = vxor.u32 %v1302, 2147483648
      %v1335 = vxor.u32 %v1303, 2147483648
      %v1336 = vxor.u32 %v1304, 2147483648
      %v1337 = vxor.u32 %v1305, 2147483648
      %v1338 = vxor.u32 %v1306, 2147483648
      %v1339 = vxor.u32 %v1307, 2147483648
      %v1340 = vxor.u32 %v1308, 2147483648
      %v1341 = vxor.u32 %v1309, 2147483648
      %v1342 = vxor.u32 %v1310, 2147483648
      %v1343 = vxor.u32 %v1311, 2147483648
      %v1344 = vxor.u32 %v1312, 2147483648
      %v1345 = vmul.f32 %v1313, 1.442695
      %v1346 = vpow.pop %v1345
      %v1347 = vmul.f32 %v1314, 1.442695
      %v1348 = vpow.pop %v1347
      %v1349 = vmul.f32 %v1315, 1.442695
      %v1350 = vpow.pop %v1349
      %v1351 = vmul.f32 %v1316, 1.442695
      %v1352 = vpow.pop %v1351
      %v1353 = vmul.f32 %v1317, 1.442695
      %v1354 = vpow.pop %v1353
      %v1355 = vmul.f32 %v1318, 1.442695
      %v1356 = vpow.pop %v1355
      %v1357 = vmul.f32 %v1319, 1.442695
      %v1358 = vpow.pop %v1357
      %v1359 = vmul.f32 %v1320, 1.442695
      %v1360 = vpow.pop %v1359
      %v1361 = vmul.f32 %v1321, 1.442695
      %v1362 = vpow.pop %v1361
      %v1363 = vmul.f32 %v1322, 1.442695
      %v1364 = vpow.pop %v1363
      %v1365 = vmul.f32 %v1323, 1.442695
      %v1366 = vpow.pop %v1365
      %v1367 = vmul.f32 %v1324, 1.442695
      %v1368 = vpow.pop %v1367
      %v1369 = vmul.f32 %v1325, 1.442695
      %v1370 = vpow.pop %v1369
      %v1371 = vmul.f32 %v1326, 1.442695
      %v1372 = vpow.pop %v1371
      %v1373 = vmul.f32 %v1327, 1.442695
      %v1374 = vpow.pop %v1373
      %v1375 = vmul.f32 %v1328, 1.442695
      %v1376 = vpow.pop %v1375
      %v1377 = vmul.f32 %v1329, 1.442695
      %v1378 = vpow.pop %v1377
      %v1379 = vmul.f32 %v1330, 1.442695
      %v1380 = vpow.pop %v1379
      %v1381 = vmul.f32 %v1331, 1.442695
      %v1382 = vpow.pop %v1381
      %v1383 = vmul.f32 %v1332, 1.442695
      %v1384 = vpow.pop %v1383
      %v1385 = vmul.f32 %v1333, 1.442695
      %v1386 = vpow.pop %v1385
      %v1387 = vmul.f32 %v1334, 1.442695
      %v1388 = vpow.pop %v1387
      %v1389 = vmul.f32 %v1335, 1.442695
      %v1390 = vpow.pop %v1389
      %v1391 = vmul.f32 %v1336, 1.442695
      %v1392 = vpow.pop %v1391
      %v1393 = vmul.f32 %v1337, 1.442695
      %v1394 = vpow.pop %v1393
      %v1395 = vmul.f32 %v1338, 1.442695
      %v1396 = vpow.pop %v1395
      %v1397 = vmul.f32 %v1339, 1.442695
      %v1398 = vpow.pop %v1397
      %v1399 = vmul.f32 %v1340, 1.442695
      %v1400 = vpow.pop %v1399
      %v1401 = vmul.f32 %v1341, 1.442695
      %v1402 = vpow.pop %v1401
      %v1403 = vmul.f32 %v1342, 1.442695
      %v1404 = vpow.pop %v1403
      %v1405 = vmul.f32 %v1343, 1.442695
      %v1406 = vpow.pop %v1405
      %v1407 = vmul.f32 %v1344, 1.442695
      %v1408 = vpow.pop %v1407
      %v1409 = vadd.f32 %v1346, 1.0
      %v1410 = vadd.f32 %v1348, 1.0
      %v1411 = vadd.f32 %v1350, 1.0
      %v1412 = vadd.f32 %v1352, 1.0
      %v1413 = vadd.f32 %v1354, 1.0
      %v1414 = vadd.f32 %v1356, 1.0
      %v1415 = vadd.f32 %v1358, 1.0
      %v1416 = vadd.f32 %v1360, 1.0
      %v1417 = vadd.f32 %v1362, 1.0
      %v1418 = vadd.f32 %v1364, 1.0
      %v1419 = vadd.f32 %v1366, 1.0
      %v1420 = vadd.f32 %v1368, 1.0
      %v1421 = vadd.f32 %v1370, 1.0
      %v1422 = vadd.f32 %v1372, 1.0
      %v1423 = vadd.f32 %v1374, 1.0
      %v1424 = vadd.f32 %v1376, 1.0
      %v1425 = vadd.f32 %v1378, 1.0
      %v1426 = vadd.f32 %v1380, 1.0
      %v1427 = vadd.f32 %v1382, 1.0
      %v1428 = vadd.f32 %v1384, 1.0
      %v1429 = vadd.f32 %v1386, 1.0
      %v1430 = vadd.f32 %v1388, 1.0
      %v1431 = vadd.f32 %v1390, 1.0
      %v1432 = vadd.f32 %v1392, 1.0
      %v1433 = vadd.f32 %v1394, 1.0
      %v1434 = vadd.f32 %v1396, 1.0
      %v1435 = vadd.f32 %v1398, 1.0
      %v1436 = vadd.f32 %v1400, 1.0
      %v1437 = vadd.f32 %v1402, 1.0
      %v1438 = vadd.f32 %v1404, 1.0
      %v1439 = vadd.f32 %v1406, 1.0
      %v1440 = vadd.f32 %v1408, 1.0
      %v1441 = vrcp.pop %v1409
      %v1442 = vmul.f32 1.0, %v1441
      %v1443 = vrcp.pop %v1410
      %v1444 = vmul.f32 1.0, %v1443
      %v1445 = vrcp.pop %v1411
      %v1446 = vmul.f32 1.0, %v1445
      %v1447 = vrcp.pop %v1412
      %v1448 = vmul.f32 1.0, %v1447
      %v1449 = vrcp.pop %v1413
      %v1450 = vmul.f32 1.0, %v1449
      %v1451 = vrcp.pop %v1414
      %v1452 = vmul.f32 1.0, %v1451
      %v1453 = vrcp.pop %v1415
      %v1454 = vmul.f32 1.0, %v1453
      %v1455 = vrcp.pop %v1416
      %v1456 = vmul.f32 1.0, %v1455
      %v1457 = vrcp.pop %v1417
      %v1458 = vmul.f32 1.0, %v1457
      %v1459 = vrcp.pop %v1418
      %v1460 = vmul.f32 1.0, %v1459
      %v1461 = vrcp.pop %v1419
      %v1462 = vmul.f32 1.0, %v1461
      %v1463 = vrcp.pop %v1420
      %v1464 = vmul.f32 1.0, %v1463
      %v1465 = vrcp.pop %v1421
      %v1466 = vmul.f32 1.0, %v1465
      %v1467 = vrcp.pop %v1422
      %v1468 = vmul.f32 1.0, %v1467
      %v1469 = vrcp.pop %v1423
      %v1470 = vmul.f32 1.0, %v1469
      %v1471 = vrcp.pop %v1424
      %v1472 = vmul.f32 1.0, %v1471
      %v1473 = vrcp.pop %v1425
      %v1474 = vmul.f32 1.0, %v1473
      %v1475 = vrcp.pop %v1426
      %v1476 = vmul.f32 1.0, %v1475
      %v1477 = vrcp.pop %v1427
      %v1478 = vmul.f32 1.0, %v1477
      %v1479 = vrcp.pop %v1428
      %v1480 = vmul.f32 1.0, %v1479
      %v1481 = vrcp.pop %v1429
      %v1482 = vmul.f32 1.0, %v1481
      %v1483 = vrcp.pop %v1430
      %v1484 = vmul.f32 1.0, %v1483
      %v1485 = vrcp.pop %v1431
      %v1486 = vmul.f32 1.0, %v1485
      %v1487 = vrcp.pop %v1432
      %v1488 = vmul.f32 1.0, %v1487
      %v1489 = vrcp.pop %v1433
      %v1490 = vmul.f32 1.0, %v1489
      %v1491 = vrcp.pop %v1434
      %v1492 = vmul.f32 1.0, %v1491
      %v1493 = vrcp.pop %v1435
      %v1494 = vmul.f32 1.0, %v1493
      %v1495 = vrcp.pop %v1436
      %v1496 = vmul.f32 1.0, %v1495
      %v1497 = vrcp.pop %v1437
      %v1498 = vmul.f32 1.0, %v1497
      %v1499 = vrcp.pop %v1438
      %v1500 = vmul.f32 1.0, %v1499
      %v1501 = vrcp.pop %v1439
      %v1502 = vmul.f32 1.0, %v1501
      %v1503 = vrcp.pop %v1440
      %v1504 = vmul.f32 1.0, %v1503
      %v1505 = vmul.f32 %v1281, %v1442
      %v1506 = vmul.f32 %v1282, %v1444
      %v1507 = vmul.f32 %v1283, %v1446
      %v1508 = vmul.f32 %v1284, %v1448
      %v1509 = vmul.f32 %v1285, %v1450
      %v1510 = vmul.f32 %v1286, %v1452
      %v1511 = vmul.f32 %v1287, %v1454
      %v1512 = vmul.f32 %v1288, %v1456
      %v1513 = vmul.f32 %v1289, %v1458
      %v1514 = vmul.f32 %v1290, %v1460
      %v1515 = vmul.f32 %v1291, %v1462
      %v1516 = vmul.f32 %v1292, %v1464
      %v1517 = vmul.f32 %v1293, %v1466
      %v1518 = vmul.f32 %v1294, %v1468
      %v1519 = vmul.f32 %v1295, %v1470
      %v1520 = vmul.f32 %v1296, %v1472
      %v1521 = vmul.f32 %v1297, %v1474
      %v1522 = vmul.f32 %v1298, %v1476
      %v1523 = vmul.f32 %v1299, %v1478
      %v1524 = vmul.f32 %v1300, %v1480
      %v1525 = vmul.f32 %v1301, %v1482
      %v1526 = vmul.f32 %v1302, %v1484
      %v1527 = vmul.f32 %v1303, %v1486
      %v1528 = vmul.f32 %v1304, %v1488
      %v1529 = vmul.f32 %v1305, %v1490
      %v1530 = vmul.f32 %v1306, %v1492
      %v1531 = vmul.f32 %v1307, %v1494
      %v1532 = vmul.f32 %v1308, %v1496
      %v1533 = vmul.f32 %v1309, %v1498
      %v1534 = vmul.f32 %v1310, %v1500
      %v1535 = vmul.f32 %v1311, %v1502
      %v1536 = vmul.f32 %v1312, %v1504
      %v1537 = vld [vmem:[%s3] sm:$0xf]
      %v1539 = vsel %vm225, %v1505, 0
      %v1542 = vsel %vm225, %v1506, 0
      %v1545 = vsel %vm225, %v1507, 0
      %v1548 = vsel %vm225, %v1508, 0
      %v1551 = vsel %vm225, %v1509, 0
      %v1554 = vsel %vm225, %v1510, 0
      %v1557 = vsel %vm225, %v1511, 0
      %v1560 = vsel %vm225, %v1512, 0
      %v1563 = vsel %vm225, %v1513, 0
      %v1566 = vsel %vm225, %v1514, 0
      %v1569 = vsel %vm225, %v1515, 0
      %v1572 = vsel %vm225, %v1516, 0
      %v1575 = vsel %vm225, %v1517, 0
      %v1578 = vsel %vm225, %v1518, 0
      %v1581 = vsel %vm225, %v1519, 0
      %v1584 = vsel %vm225, %v1520, 0
      %v1587 = vsel %vm225, %v1521, 0
      %v1590 = vsel %vm225, %v1522, 0
      %v1593 = vsel %vm225, %v1523, 0
      %v1596 = vsel %vm225, %v1524, 0
      %v1599 = vsel %vm225, %v1525, 0
      %v1602 = vsel %vm225, %v1526, 0
      %v1605 = vsel %vm225, %v1527, 0
      %v1608 = vsel %vm225, %v1528, 0
      %v1611 = vsel %vm225, %v1529, 0
      %v1614 = vsel %vm225, %v1530, 0
      %v1617 = vsel %vm225, %v1531, 0
      %v1620 = vsel %vm225, %v1532, 0
      %v1623 = vsel %vm225, %v1533, 0
      %v1626 = vsel %vm225, %v1534, 0
      %v1629 = vsel %vm225, %v1535, 0
      %v1632 = vsel %vm225, %v1536, 0
      %vm1634 = vcmask 1043456
      %v1636 = vsel %vm1634, %v1537, 0
      %1638 = vmatprep.subr.mxu0 0.0
      %1639 = vmatpush1.msra.mxu0 %v1636
      %1640 = vmatprep.subr.mxu0 0.0
      %1641 = vmatpush1.msra.mxu0 0.0
      %1642 = vmatprep.subr.mxu0 0.0
      %1643 = vmatpush1.msra.mxu0 0.0
      %1644 = vmatprep.subr.mxu0 0.0
      %1645 = vmatpush1.msra.mxu0 0.0
      %1646 = vmatprep.subr.mxu0 0.0
      %1647 = vmatpush1.msra.mxu0 0.0
      %1648 = vmatprep.subr.mxu0 0.0
      %1649 = vmatpush1.msra.mxu0 0.0
      %1650 = vmatprep.subr.mxu0 0.0
      %1651 = vmatpush1.msra.mxu0 0.0
      %1652 = vmatprep.subr.mxu0 0.0
      %1653 = vmatpush1.msra.mxu0 0.0
      %1654 = vmatprep.subr.mxu0 0.0
      %1655 = vmatpush1.msra.mxu0 0.0
      %1656 = vmatprep.subr.mxu0 0.0
      %1657 = vmatpush1.msra.mxu0 0.0
      %1658 = vmatprep.subr.mxu0 0.0
      %1659 = vmatpush1.msra.mxu0 0.0
      %1660 = vmatprep.subr.mxu0 0.0
      %1661 = vmatpush1.msra.mxu0 0.0
      %1662 = vmatprep.subr.mxu0 0.0
      %1663 = vmatpush1.msra.mxu0 0.0
      %1664 = vmatprep.subr.mxu0 0.0
      %1665 = vmatpush1.msra.mxu0 0.0
      %1666 = vmatprep.subr.mxu0 0.0
      %1667 = vmatpush1.msra.mxu0 0.0
      %1668 = vmatprep.subr.mxu0 0.0
      %1669 = vmatpush1.msra.mxu0 0.0
      %1670 = vmatprep.subr.mxu0 0.0
      %1671 = vmatpush1.msra.mxu0 0.0
      %1672 = vmatprep.subr.mxu0 0.0
      %1673 = vmatpush1.msra.mxu0 0.0
      %1674 = vmatprep.subr.mxu0 0.0
      %1675 = vmatpush1.msra.mxu0 0.0
      %1676 = vmatprep.subr.mxu0 0.0
      %1677 = vmatpush1.msra.mxu0 0.0
      %1678 = vmatprep.subr.mxu0 0.0
      %1679 = vmatpush1.msra.mxu0 0.0
      %1680 = vmatprep.subr.mxu0 0.0
      %1681 = vmatpush1.msra.mxu0 0.0
      %1682 = vmatprep.subr.mxu0 0.0
      %1683 = vmatpush1.msra.mxu0 0.0
      %1684 = vmatprep.subr.mxu0 0.0
      %1685 = vmatpush1.msra.mxu0 0.0
      %1686 = vmatprep.subr.mxu0 0.0
      %1687 = vmatpush1.msra.mxu0 0.0
      %1688 = vmatprep.subr.mxu0 0.0
      %1689 = vmatpush1.msra.mxu0 0.0
      %1690 = vmatprep.subr.mxu0 0.0
      %1691 = vmatpush1.msra.mxu0 0.0
      %1692 = vmatprep.subr.mxu0 0.0
      %1693 = vmatpush1.msra.mxu0 0.0
      %1694 = vmatprep.subr.mxu0 0.0
      %1695 = vmatpush1.msra.mxu0 0.0
      %1696 = vmatprep.subr.mxu0 0.0
      %1697 = vmatpush1.msra.mxu0 0.0
      %1698 = vmatprep.subr.mxu0 0.0
      %1699 = vmatpush1.msra.mxu0 0.0
      %1700 = vmatprep.subr.mxu0 0.0
      %1701 = vmatpush1.msra.mxu0 0.0
      %1702 = vmatprep.mubr.f32.mxu0 0.0
      %1703 = vmatmul.mubr.f32.gmra.mrb[0].mxu0 %v1539
      %v1704 = vpop.f32.mrb[0].mxu0
      %v1705 = vadd.f32 0.0, %v1704
      %v1706 = vpop.f32.mrb[0].mxu0
      %1707 = vmatprep.mubr.f32.mxu0 0.0
      %1708 = vmatmul.mubr.f32.gmra.mrb[0].mxu0 %v1542
      %v1709 = vpop.f32.mrb[0].mxu0
      %v1710 = vadd.f32 0.0, %v1709
      %v1711 = vpop.f32.mrb[0].mxu0
      %1712 = vmatprep.mubr.f32.mxu0 0.0
      %1713 = vmatmul.mubr.f32.gmra.mrb[0].mxu0 %v1545
      %v1714 = vpop.f32.mrb[0].mxu0
      %v1715 = vadd.f32 0.0, %v1714
      %v1716 = vpop.f32.mrb[0].mxu0
      %1717 = vmatprep.mubr.f32.mxu0 0.0
      %1718 = vmatmul.mubr.f32.gmra.mrb[0].mxu0 %v1548
      %v1719 = vpop.f32.mrb[0].mxu0
      %v1720 = vadd.f32 0.0, %v1719
      %v1721 = vpop.f32.mrb[0].mxu0
      %1722 = vmatprep.mubr.f32.mxu0 0.0
      %1723 = vmatmul.mubr.f32.gmra.mrb[0].mxu0 %v1551
      %v1724 = vpop.f32.mrb[0].mxu0
      %v1725 = vadd.f32 0.0, %v1724
      %v1726 = vpop.f32.mrb[0].mxu0
      %1727 = vmatprep.mubr.f32.mxu0 0.0
      %1728 = vmatmul.mubr.f32.gmra.mrb[0].mxu0 %v1554
      %v1729 = vpop.f32.mrb[0].mxu0
      %v1730 = vadd.f32 0.0, %v1729
      %v1731 = vpop.f32.mrb[0].mxu0
      %1732 = vmatprep.mubr.f32.mxu0 0.0
      %1733 = vmatmul.mubr.f32.gmra.mrb[0].mxu0 %v1557
      %v1734 = vpop.f32.mrb[0].mxu0
      %v1735 = vadd.f32 0.0, %v1734
      %v1736 = vpop.f32.mrb[0].mxu0
      %1737 = vmatprep.mubr.f32.mxu0 0.0
      %1738 = vmatmul.mubr.f32.gmra.mrb[0].mxu0 %v1560
      %v1739 = vpop.f32.mrb[0].mxu0
      %v1740 = vadd.f32 0.0, %v1739
      %v1741 = vpop.f32.mrb[0].mxu0
      %1742 = vmatprep.mubr.f32.mxu0 0.0
      %1743 = vmatmul.mubr.f32.gmra.mrb[0].mxu0 %v1563
      %v1744 = vpop.f32.mrb[0].mxu0
      %v1745 = vadd.f32 0.0, %v1744
      %v1746 = vpop.f32.mrb[0].mxu0
      %1747 = vmatprep.mubr.f32.mxu0 0.0
      %1748 = vmatmul.mubr.f32.gmra.mrb[0].mxu0 %v1566
      %v1749 = vpop.f32.mrb[0].mxu0
      %v1750 = vadd.f32 0.0, %v1749
      %v1751 = vpop.f32.mrb[0].mxu0
      %1752 = vmatprep.mubr.f32.mxu0 0.0
      %1753 = vmatmul.mubr.f32.gmra.mrb[0].mxu0 %v1569
      %v1754 = vpop.f32.mrb[0].mxu0
      %v1755 = vadd.f32 0.0, %v1754
      %v1756 = vpop.f32.mrb[0].mxu0
      %1757 = vmatprep.mubr.f32.mxu0 0.0
      %1758 = vmatmul.mubr.f32.gmra.mrb[0].mxu0 %v1572
      %v1759 = vpop.f32.mrb[0].mxu0
      %v1760 = vadd.f32 0.0, %v1759
      %v1761 = vpop.f32.mrb[0].mxu0
      %1762 = vmatprep.mubr.f32.mxu0 0.0
      %1763 = vmatmul.mubr.f32.gmra.mrb[0].mxu0 %v1575
      %v1764 = vpop.f32.mrb[0].mxu0
      %v1765 = vadd.f32 0.0, %v1764
      %v1766 = vpop.f32.mrb[0].mxu0
      %1767 = vmatprep.mubr.f32.mxu0 0.0
      %1768 = vmatmul.mubr.f32.gmra.mrb[0].mxu0 %v1578
      %v1769 = vpop.f32.mrb[0].mxu0
      %v1770 = vadd.f32 0.0, %v1769
      %v1771 = vpop.f32.mrb[0].mxu0
      %1772 = vmatprep.mubr.f32.mxu0 0.0
      %1773 = vmatmul.mubr.f32.gmra.mrb[0].mxu0 %v1581
      %v1774 = vpop.f32.mrb[0].mxu0
      %v1775 = vadd.f32 0.0, %v1774
      %v1776 = vpop.f32.mrb[0].mxu0
      %1777 = vmatprep.mubr.f32.mxu0 0.0
      %1778 = vmatmul.mubr.f32.gmra.mrb[0].mxu0 %v1584
      %v1779 = vpop.f32.mrb[0].mxu0
      %v1780 = vadd.f32 0.0, %v1779
      %v1781 = vpop.f32.mrb[0].mxu0
      %1782 = vmatprep.mubr.f32.mxu0 0.0
      %1783 = vmatmul.mubr.f32.gmra.mrb[0].mxu0 %v1587
      %v1784 = vpop.f32.mrb[0].mxu0
      %v1785 = vadd.f32 0.0, %v1784
      %v1786 = vpop.f32.mrb[0].mxu0
      %1787 = vmatprep.mubr.f32.mxu0 0.0
      %1788 = vmatmul.mubr.f32.gmra.mrb[0].mxu0 %v1590
      %v1789 = vpop.f32.mrb[0].mxu0
      %v1790 = vadd.f32 0.0, %v1789
      %v1791 = vpop.f32.mrb[0].mxu0
      %1792 = vmatprep.mubr.f32.mxu0 0.0
      %1793 = vmatmul.mubr.f32.gmra.mrb[0].mxu0 %v1593
      %v1794 = vpop.f32.mrb[0].mxu0
      %v1795 = vadd.f32 0.0, %v1794
      %v1796 = vpop.f32.mrb[0].mxu0
      %1797 = vmatprep.mubr.f32.mxu0 0.0
      %1798 = vmatmul.mubr.f32.gmra.mrb[0].mxu0 %v1596
      %v1799 = vpop.f32.mrb[0].mxu0
      %v1800 = vadd.f32 0.0, %v1799
      %v1801 = vpop.f32.mrb[0].mxu0
      %1802 = vmatprep.mubr.f32.mxu0 0.0
      %1803 = vmatmul.mubr.f32.gmra.mrb[0].mxu0 %v1599
      %v1804 = vpop.f32.mrb[0].mxu0
      %v1805 = vadd.f32 0.0, %v1804
      %v1806 = vpop.f32.mrb[0].mxu0
      %1807 = vmatprep.mubr.f32.mxu0 0.0
      %1808 = vmatmul.mubr.f32.gmra.mrb[0].mxu0 %v1602
      %v1809 = vpop.f32.mrb[0].mxu0
      %v1810 = vadd.f32 0.0, %v1809
      %v1811 = vpop.f32.mrb[0].mxu0
      %1812 = vmatprep.mubr.f32.mxu0 0.0
      %1813 = vmatmul.mubr.f32.gmra.mrb[0].mxu0 %v1605
      %v1814 = vpop.f32.mrb[0].mxu0
      %v1815 = vadd.f32 0.0, %v1814
      %v1816 = vpop.f32.mrb[0].mxu0
      %1817 = vmatprep.mubr.f32.mxu0 0.0
      %1818 = vmatmul.mubr.f32.gmra.mrb[0].mxu0 %v1608
      %v1819 = vpop.f32.mrb[0].mxu0
      %v1820 = vadd.f32 0.0, %v1819
      %v1821 = vpop.f32.mrb[0].mxu0
      %1822 = vmatprep.mubr.f32.mxu0 0.0
      %1823 = vmatmul.mubr.f32.gmra.mrb[0].mxu0 %v1611
      %v1824 = vpop.f32.mrb[0].mxu0
      %v1825 = vadd.f32 0.0, %v1824
      %v1826 = vpop.f32.mrb[0].mxu0
      %1827 = vmatprep.mubr.f32.mxu0 0.0
      %1828 = vmatmul.mubr.f32.gmra.mrb[0].mxu0 %v1614
      %v1829 = vpop.f32.mrb[0].mxu0
      %v1830 = vadd.f32 0.0, %v1829
      %v1831 = vpop.f32.mrb[0].mxu0
      %1832 = vmatprep.mubr.f32.mxu0 0.0
      %1833 = vmatmul.mubr.f32.gmra.mrb[0].mxu0 %v1617
      %v1834 = vpop.f32.mrb[0].mxu0
      %v1835 = vadd.f32 0.0, %v1834
      %v1836 = vpop.f32.mrb[0].mxu0
      %1837 = vmatprep.mubr.f32.mxu0 0.0
      %1838 = vmatmul.mubr.f32.gmra.mrb[0].mxu0 %v1620
      %v1839 = vpop.f32.mrb[0].mxu0
      %v1840 = vadd.f32 0.0, %v1839
      %v1841 = vpop.f32.mrb[0].mxu0
      %1842 = vmatprep.mubr.f32.mxu0 0.0
      %1843 = vmatmul.mubr.f32.gmra.mrb[0].mxu0 %v1623
      %v1844 = vpop.f32.mrb[0].mxu0
      %v1845 = vadd.f32 0.0, %v1844
      %v1846 = vpop.f32.mrb[0].mxu0
      %1847 = vmatprep.mubr.f32.mxu0 0.0
      %1848 = vmatmul.mubr.f32.gmra.mrb[0].mxu0 %v1626
      %v1849 = vpop.f32.mrb[0].mxu0
      %v1850 = vadd.f32 0.0, %v1849
      %v1851 = vpop.f32.mrb[0].mxu0
      %1852 = vmatprep.mubr.f32.mxu0 0.0
      %1853 = vmatmul.mubr.f32.gmra.mrb[0].mxu0 %v1629
      %v1854 = vpop.f32.mrb[0].mxu0
      %v1855 = vadd.f32 0.0, %v1854
      %v1856 = vpop.f32.mrb[0].mxu0
      %1857 = vmatprep.mubr.f32.mxu0 0.0
      %1858 = vmatmul.mubr.f32.gmra.mrb[0].mxu0 %v1632
      %v1859 = vpop.f32.mrb[0].mxu0
      %v1860 = vadd.f32 0.0, %v1859
      %v1861 = vpop.f32.mrb[0].mxu0
      %1862 = vdwg.mxu0
      %v1863 = vld [vmem:[%s4] sm:$0x1]
      %v1864 = vlaneseq
      %v1865 = vshrl.u32 %v1864, 7
      %v1866 = vsub.s32 0, %v1865
      %v1867 = vrot.slane %v1863, %v1866
      %v1868 = vmul.f32 %v1705, %v1867
      %v1869 = vmul.f32 %v1710, %v1867
      %v1870 = vmul.f32 %v1715, %v1867
      %v1871 = vmul.f32 %v1720, %v1867
      %v1872 = vmul.f32 %v1725, %v1867
      %v1873 = vmul.f32 %v1730, %v1867
      %v1874 = vmul.f32 %v1735, %v1867
      %v1875 = vmul.f32 %v1740, %v1867
      %v1876 = vmul.f32 %v1745, %v1867
      %v1877 = vmul.f32 %v1750, %v1867
      %v1878 = vmul.f32 %v1755, %v1867
      %v1879 = vmul.f32 %v1760, %v1867
      %v1880 = vmul.f32 %v1765, %v1867
      %v1881 = vmul.f32 %v1770, %v1867
      %v1882 = vmul.f32 %v1775, %v1867
      %v1883 = vmul.f32 %v1780, %v1867
      %v1884 = vmul.f32 %v1785, %v1867
      %v1885 = vmul.f32 %v1790, %v1867
      %v1886 = vmul.f32 %v1795, %v1867
      %v1887 = vmul.f32 %v1800, %v1867
      %v1888 = vmul.f32 %v1805, %v1867
      %v1889 = vmul.f32 %v1810, %v1867
      %v1890 = vmul.f32 %v1815, %v1867
      %v1891 = vmul.f32 %v1820, %v1867
      %v1892 = vmul.f32 %v1825, %v1867
      %v1893 = vmul.f32 %v1830, %v1867
      %v1894 = vmul.f32 %v1835, %v1867
      %v1895 = vmul.f32 %v1840, %v1867
      %v1896 = vmul.f32 %v1845, %v1867
      %v1897 = vmul.f32 %v1850, %v1867
      %v1898 = vmul.f32 %v1855, %v1867
      %v1899 = vmul.f32 %v1860, %v1867
      %v1900 = vld [vmem:[%s4 + $0x1] sm:$0x1]
      %v1901 = vlaneseq
      %v1902 = vshrl.u32 %v1901, 7
      %v1903 = vsub.s32 0, %v1902
      %v1904 = vrot.slane %v1900, %v1903
      %v1905 = vadd.f32 %v1868, %v1904
      %v1906 = vadd.f32 %v1869, %v1904
      %v1907 = vadd.f32 %v1870, %v1904
      %v1908 = vadd.f32 %v1871, %v1904
      %v1909 = vadd.f32 %v1872, %v1904
      %v1910 = vadd.f32 %v1873, %v1904
      %v1911 = vadd.f32 %v1874, %v1904
      %v1912 = vadd.f32 %v1875, %v1904
      %v1913 = vadd.f32 %v1876, %v1904
      %v1914 = vadd.f32 %v1877, %v1904
      %v1915 = vadd.f32 %v1878, %v1904
      %v1916 = vadd.f32 %v1879, %v1904
      %v1917 = vadd.f32 %v1880, %v1904
      %v1918 = vadd.f32 %v1881, %v1904
      %v1919 = vadd.f32 %v1882, %v1904
      %v1920 = vadd.f32 %v1883, %v1904
      %v1921 = vadd.f32 %v1884, %v1904
      %v1922 = vadd.f32 %v1885, %v1904
      %v1923 = vadd.f32 %v1886, %v1904
      %v1924 = vadd.f32 %v1887, %v1904
      %v1925 = vadd.f32 %v1888, %v1904
      %v1926 = vadd.f32 %v1889, %v1904
      %v1927 = vadd.f32 %v1890, %v1904
      %v1928 = vadd.f32 %v1891, %v1904
      %v1929 = vadd.f32 %v1892, %v1904
      %v1930 = vadd.f32 %v1893, %v1904
      %v1931 = vadd.f32 %v1894, %v1904
      %v1932 = vadd.f32 %v1895, %v1904
      %v1933 = vadd.f32 %v1896, %v1904
      %v1934 = vadd.f32 %v1897, %v1904
      %v1935 = vadd.f32 %v1898, %v1904
      %v1936 = vadd.f32 %v1899, %v1904
      %v1937 = vxor.u32 %v1905, 2147483648
      %v1938 = vxor.u32 %v1906, 2147483648
      %v1939 = vxor.u32 %v1907, 2147483648
      %v1940 = vxor.u32 %v1908, 2147483648
      %v1941 = vxor.u32 %v1909, 2147483648
      %v1942 = vxor.u32 %v1910, 2147483648
      %v1943 = vxor.u32 %v1911, 2147483648
      %v1944 = vxor.u32 %v1912, 2147483648
      %v1945 = vxor.u32 %v1913, 2147483648
      %v1946 = vxor.u32 %v1914, 2147483648
      %v1947 = vxor.u32 %v1915, 2147483648
      %v1948 = vxor.u32 %v1916, 2147483648
      %v1949 = vxor.u32 %v1917, 2147483648
      %v1950 = vxor.u32 %v1918, 2147483648
      %v1951 = vxor.u32 %v1919, 2147483648
      %v1952 = vxor.u32 %v1920, 2147483648
      %v1953 = vxor.u32 %v1921, 2147483648
      %v1954 = vxor.u32 %v1922, 2147483648
      %v1955 = vxor.u32 %v1923, 2147483648
      %v1956 = vxor.u32 %v1924, 2147483648
      %v1957 = vxor.u32 %v1925, 2147483648
      %v1958 = vxor.u32 %v1926, 2147483648
      %v1959 = vxor.u32 %v1927, 2147483648
      %v1960 = vxor.u32 %v1928, 2147483648
      %v1961 = vxor.u32 %v1929, 2147483648
      %v1962 = vxor.u32 %v1930, 2147483648
      %v1963 = vxor.u32 %v1931, 2147483648
      %v1964 = vxor.u32 %v1932, 2147483648
      %v1965 = vxor.u32 %v1933, 2147483648
      %v1966 = vxor.u32 %v1934, 2147483648
      %v1967 = vxor.u32 %v1935, 2147483648
      %v1968 = vxor.u32 %v1936, 2147483648
      %v1969 = vmul.f32 %v1937, 1.442695
      %v1970 = vpow.pop %v1969
      %v1971 = vmul.f32 %v1938, 1.442695
      %v1972 = vpow.pop %v1971
      %v1973 = vmul.f32 %v1939, 1.442695
      %v1974 = vpow.pop %v1973
      %v1975 = vmul.f32 %v1940, 1.442695
      %v1976 = vpow.pop %v1975
      %v1977 = vmul.f32 %v1941, 1.442695
      %v1978 = vpow.pop %v1977
      %v1979 = vmul.f32 %v1942, 1.442695
      %v1980 = vpow.pop %v1979
      %v1981 = vmul.f32 %v1943, 1.442695
      %v1982 = vpow.pop %v1981
      %v1983 = vmul.f32 %v1944, 1.442695
      %v1984 = vpow.pop %v1983
      %v1985 = vmul.f32 %v1945, 1.442695
      %v1986 = vpow.pop %v1985
      %v1987 = vmul.f32 %v1946, 1.442695
      %v1988 = vpow.pop %v1987
      %v1989 = vmul.f32 %v1947, 1.442695
      %v1990 = vpow.pop %v1989
      %v1991 = vmul.f32 %v1948, 1.442695
      %v1992 = vpow.pop %v1991
      %v1993 = vmul.f32 %v1949, 1.442695
      %v1994 = vpow.pop %v1993
      %v1995 = vmul.f32 %v1950, 1.442695
      %v1996 = vpow.pop %v1995
      %v1997 = vmul.f32 %v1951, 1.442695
      %v1998 = vpow.pop %v1997
      %v1999 = vmul.f32 %v1952, 1.442695
      %v2000 = vpow.pop %v1999
      %v2001 = vmul.f32 %v1953, 1.442695
      %v2002 = vpow.pop %v2001
      %v2003 = vmul.f32 %v1954, 1.442695
      %v2004 = vpow.pop %v2003
      %v2005 = vmul.f32 %v1955, 1.442695
      %v2006 = vpow.pop %v2005
      %v2007 = vmul.f32 %v1956, 1.442695
      %v2008 = vpow.pop %v2007
      %v2009 = vmul.f32 %v1957, 1.442695
      %v2010 = vpow.pop %v2009
      %v2011 = vmul.f32 %v1958, 1.442695
      %v2012 = vpow.pop %v2011
      %v2013 = vmul.f32 %v1959, 1.442695
      %v2014 = vpow.pop %v2013
      %v2015 = vmul.f32 %v1960, 1.442695
      %v2016 = vpow.pop %v2015
      %v2017 = vmul.f32 %v1961, 1.442695
      %v2018 = vpow.pop %v2017
      %v2019 = vmul.f32 %v1962, 1.442695
      %v2020 = vpow.pop %v2019
      %v2021 = vmul.f32 %v1963, 1.442695
      %v2022 = vpow.pop %v2021
      %v2023 = vmul.f32 %v1964, 1.442695
      %v2024 = vpow.pop %v2023
      %v2025 = vmul.f32 %v1965, 1.442695
      %v2026 = vpow.pop %v2025
      %v2027 = vmul.f32 %v1966, 1.442695
      %v2028 = vpow.pop %v2027
      %v2029 = vmul.f32 %v1967, 1.442695
      %v2030 = vpow.pop %v2029
      %v2031 = vmul.f32 %v1968, 1.442695
      %v2032 = vpow.pop %v2031
      %v2033 = vadd.f32 %v1970, 1.0
      %v2034 = vadd.f32 %v1972, 1.0
      %v2035 = vadd.f32 %v1974, 1.0
      %v2036 = vadd.f32 %v1976, 1.0
      %v2037 = vadd.f32 %v1978, 1.0
      %v2038 = vadd.f32 %v1980, 1.0
      %v2039 = vadd.f32 %v1982, 1.0
      %v2040 = vadd.f32 %v1984, 1.0
      %v2041 = vadd.f32 %v1986, 1.0
      %v2042 = vadd.f32 %v1988, 1.0
      %v2043 = vadd.f32 %v1990, 1.0
      %v2044 = vadd.f32 %v1992, 1.0
      %v2045 = vadd.f32 %v1994, 1.0
      %v2046 = vadd.f32 %v1996, 1.0
      %v2047 = vadd.f32 %v1998, 1.0
      %v2048 = vadd.f32 %v2000, 1.0
      %v2049 = vadd.f32 %v2002, 1.0
      %v2050 = vadd.f32 %v2004, 1.0
      %v2051 = vadd.f32 %v2006, 1.0
      %v2052 = vadd.f32 %v2008, 1.0
      %v2053 = vadd.f32 %v2010, 1.0
      %v2054 = vadd.f32 %v2012, 1.0
      %v2055 = vadd.f32 %v2014, 1.0
      %v2056 = vadd.f32 %v2016, 1.0
      %v2057 = vadd.f32 %v2018, 1.0
      %v2058 = vadd.f32 %v2020, 1.0
      %v2059 = vadd.f32 %v2022, 1.0
      %v2060 = vadd.f32 %v2024, 1.0
      %v2061 = vadd.f32 %v2026, 1.0
      %v2062 = vadd.f32 %v2028, 1.0
      %v2063 = vadd.f32 %v2030, 1.0
      %v2064 = vadd.f32 %v2032, 1.0
      %v2065 = vrcp.pop %v2033
      %v2066 = vmul.f32 1.0, %v2065
      %v2067 = vrcp.pop %v2034
      %v2068 = vmul.f32 1.0, %v2067
      %v2069 = vrcp.pop %v2035
      %v2070 = vmul.f32 1.0, %v2069
      %v2071 = vrcp.pop %v2036
      %v2072 = vmul.f32 1.0, %v2071
      %v2073 = vrcp.pop %v2037
      %v2074 = vmul.f32 1.0, %v2073
      %v2075 = vrcp.pop %v2038
      %v2076 = vmul.f32 1.0, %v2075
      %v2077 = vrcp.pop %v2039
      %v2078 = vmul.f32 1.0, %v2077
      %v2079 = vrcp.pop %v2040
      %v2080 = vmul.f32 1.0, %v2079
      %v2081 = vrcp.pop %v2041
      %v2082 = vmul.f32 1.0, %v2081
      %v2083 = vrcp.pop %v2042
      %v2084 = vmul.f32 1.0, %v2083
      %v2085 = vrcp.pop %v2043
      %v2086 = vmul.f32 1.0, %v2085
      %v2087 = vrcp.pop %v2044
      %v2088 = vmul.f32 1.0, %v2087
      %v2089 = vrcp.pop %v2045
      %v2090 = vmul.f32 1.0, %v2089
      %v2091 = vrcp.pop %v2046
      %v2092 = vmul.f32 1.0, %v2091
      %v2093 = vrcp.pop %v2047
      %v2094 = vmul.f32 1.0, %v2093
      %v2095 = vrcp.pop %v2048
      %v2096 = vmul.f32 1.0, %v2095
      %v2097 = vrcp.pop %v2049
      %v2098 = vmul.f32 1.0, %v2097
      %v2099 = vrcp.pop %v2050
      %v2100 = vmul.f32 1.0, %v2099
      %v2101 = vrcp.pop %v2051
      %v2102 = vmul.f32 1.0, %v2101
      %v2103 = vrcp.pop %v2052
      %v2104 = vmul.f32 1.0, %v2103
      %v2105 = vrcp.pop %v2053
      %v2106 = vmul.f32 1.0, %v2105
      %v2107 = vrcp.pop %v2054
      %v2108 = vmul.f32 1.0, %v2107
      %v2109 = vrcp.pop %v2055
      %v2110 = vmul.f32 1.0, %v2109
      %v2111 = vrcp.pop %v2056
      %v2112 = vmul.f32 1.0, %v2111
      %v2113 = vrcp.pop %v2057
      %v2114 = vmul.f32 1.0, %v2113
      %v2115 = vrcp.pop %v2058
      %v2116 = vmul.f32 1.0, %v2115
      %v2117 = vrcp.pop %v2059
      %v2118 = vmul.f32 1.0, %v2117
      %v2119 = vrcp.pop %v2060
      %v2120 = vmul.f32 1.0, %v2119
      %v2121 = vrcp.pop %v2061
      %v2122 = vmul.f32 1.0, %v2121
      %v2123 = vrcp.pop %v2062
      %v2124 = vmul.f32 1.0, %v2123
      %v2125 = vrcp.pop %v2063
      %v2126 = vmul.f32 1.0, %v2125
      %v2127 = vrcp.pop %v2064
      %v2128 = vmul.f32 1.0, %v2127
      %v2129 = vmul.f32 %v1905, %v2066
      %v2130 = vmul.f32 %v1906, %v2068
      %v2131 = vmul.f32 %v1907, %v2070
      %v2132 = vmul.f32 %v1908, %v2072
      %v2133 = vmul.f32 %v1909, %v2074
      %v2134 = vmul.f32 %v1910, %v2076
      %v2135 = vmul.f32 %v1911, %v2078
      %v2136 = vmul.f32 %v1912, %v2080
      %v2137 = vmul.f32 %v1913, %v2082
      %v2138 = vmul.f32 %v1914, %v2084
      %v2139 = vmul.f32 %v1915, %v2086
      %v2140 = vmul.f32 %v1916, %v2088
      %v2141 = vmul.f32 %v1917, %v2090
      %v2142 = vmul.f32 %v1918, %v2092
      %v2143 = vmul.f32 %v1919, %v2094
      %v2144 = vmul.f32 %v1920, %v2096
      %v2145 = vmul.f32 %v1921, %v2098
      %v2146 = vmul.f32 %v1922, %v2100
      %v2147 = vmul.f32 %v1923, %v2102
      %v2148 = vmul.f32 %v1924, %v2104
      %v2149 = vmul.f32 %v1925, %v2106
      %v2150 = vmul.f32 %v1926, %v2108
      %v2151 = vmul.f32 %v1927, %v2110
      %v2152 = vmul.f32 %v1928, %v2112
      %v2153 = vmul.f32 %v1929, %v2114
      %v2154 = vmul.f32 %v1930, %v2116
      %v2155 = vmul.f32 %v1931, %v2118
      %v2156 = vmul.f32 %v1932, %v2120
      %v2157 = vmul.f32 %v1933, %v2122
      %v2158 = vmul.f32 %v1934, %v2124
      %v2159 = vmul.f32 %v1935, %v2126
      %v2160 = vmul.f32 %v1936, %v2128
      %vm2161 = vcmask 64512
      %2162 = vst.msk [vmem:[%s224] sm:$0xff] %vm2161, %v2129
      %2163 = vst.msk [vmem:[%s224 + $0x8] sm:$0xff] %vm2161, %v2130
      %2164 = vst.msk [vmem:[%s224 + $0x10] sm:$0xff] %vm2161, %v2131
      %2165 = vst.msk [vmem:[%s224 + $0x18] sm:$0xff] %vm2161, %v2132
      %2166 = vst.msk [vmem:[%s224 + $0x20] sm:$0xff] %vm2161, %v2133
      %2167 = vst.msk [vmem:[%s224 + $0x28] sm:$0xff] %vm2161, %v2134
      %2168 = vst.msk [vmem:[%s224 + $0x30] sm:$0xff] %vm2161, %v2135
      %2169 = vst.msk [vmem:[%s224 + $0x38] sm:$0xff] %vm2161, %v2136
      %2170 = vst.msk [vmem:[%s224 + $0x40] sm:$0xff] %vm2161, %v2137
      %2171 = vst.msk [vmem:[%s224 + $0x48] sm:$0xff] %vm2161, %v2138
      %2172 = vst.msk [vmem:[%s224 + $0x50] sm:$0xff] %vm2161, %v2139
      %2173 = vst.msk [vmem:[%s224 + $0x58] sm:$0xff] %vm2161, %v2140
      %2174 = vst.msk [vmem:[%s224 + $0x60] sm:$0xff] %vm2161, %v2141
      %2175 = vst.msk [vmem:[%s224 + $0x68] sm:$0xff] %vm2161, %v2142
      %2176 = vst.msk [vmem:[%s224 + $0x70] sm:$0xff] %vm2161, %v2143
      %2177 = vst.msk [vmem:[%s224 + $0x78] sm:$0xff] %vm2161, %v2144
      %2178 = vst.msk [vmem:[%s224 + $0x80] sm:$0xff] %vm2161, %v2145
      %2179 = vst.msk [vmem:[%s224 + $0x88] sm:$0xff] %vm2161, %v2146
      %2180 = vst.msk [vmem:[%s224 + $0x90] sm:$0xff] %vm2161, %v2147
      %2181 = vst.msk [vmem:[%s224 + $0x98] sm:$0xff] %vm2161, %v2148
      %2182 = vst.msk [vmem:[%s224 + $0xa0] sm:$0xff] %vm2161, %v2149
      %2183 = vst.msk [vmem:[%s224 + $0xa8] sm:$0xff] %vm2161, %v2150
      %2184 = vst.msk [vmem:[%s224 + $0xb0] sm:$0xff] %vm2161, %v2151
      %2185 = vst.msk [vmem:[%s224 + $0xb8] sm:$0xff] %vm2161, %v2152
      %2186 = vst.msk [vmem:[%s224 + $0xc0] sm:$0xff] %vm2161, %v2153
      %2187 = vst.msk [vmem:[%s224 + $0xc8] sm:$0xff] %vm2161, %v2154
      %2188 = vst.msk [vmem:[%s224 + $0xd0] sm:$0xff] %vm2161, %v2155
      %2189 = vst.msk [vmem:[%s224 + $0xd8] sm:$0xff] %vm2161, %v2156
      %2190 = vst.msk [vmem:[%s224 + $0xe0] sm:$0xff] %vm2161, %v2157
      %2191 = vst.msk [vmem:[%s224 + $0xe8] sm:$0xff] %vm2161, %v2158
      %2192 = vst.msk [vmem:[%s224 + $0xf0] sm:$0xff] %vm2161, %v2159
      %2193 = vst.msk [vmem:[%s224 + $0xf8] sm:$0xff] %vm2161, %v2160
      %p2194 = scmp.lt.s32.totalorder %s16, 1
      %s2195 = scalar_select %p2194, %s16, 1
      %s2196 = smul.addr %s2195, 32
      %s2197 = smul.addr %s2196, 8
      %s2198 = scalar_lea.vmem %s5, %s2197
      // Predicated region
      $region41: #{tpu_custom_call.1} parent=39 // pred_check
        %p2199 = pneg %p144
      $region42: #{tpu_custom_call.1} parent=39 // pred_check_branch
        %2201 = sbr.rel (%p2199) target = $region44
      $region43: #{tpu_custom_call.1} parent=39 // pred_region
        _
      $region44: #{tpu_custom_call.1} parent=39 // pred_fallthru
        _
    $region40: #{tpu_custom_call.1} parent=5 // pred_fallthru
      _
    %p2202 = scmp.le.s32.totalorder 2, %s11
    // Predicated region
    $region45: #{tpu_custom_call.1} parent=5 // pred_check
      %p2203 = pneg %p2202
    $region46: #{tpu_custom_call.1} parent=5 // pred_check_branch
      %2205 = sbr.rel (%p2203) target = $region48
    $region47: #{tpu_custom_call.1} parent=5 // pred_region
      %s2206 = ssub.s32 %s11, 2
      // Predicated region
      $region49: #{tpu_custom_call.1} parent=47 // pred_check
        %p2207 = pneg %p150
      $region50: #{tpu_custom_call.1} parent=47 // pred_check_branch
        %2209 = sbr.rel (%p2207) target = $region52
      $region51: #{tpu_custom_call.1} parent=47 // pred_region
        %p2210 = scmp.lt.s32.totalorder %s17, 1
        %s2211 = scalar_select %p2210, %s17, 1
        %s2212 = smul.addr %s2211, 32
        %s2213 = smul.addr %s2212, 8
        %s2214 = scalar_lea.vmem %s5, %s2213
      $region52: #{tpu_custom_call.1} parent=47 // pred_fallthru
        _
    $region48: #{tpu_custom_call.1} parent=5 // pred_fallthru
      _
  $region6: #{tpu_custom_call.1} parent=0 // loop_footer
    %s15 = sadd.s32 1, %s11
  $region7: #{tpu_custom_call.1} parent=0 // loop_footer_branch
    %10 = sbr.rel target = $region3
  $region8: #{tpu_custom_call.1} parent=0 // loop_exit
    _

</llo_original>
